<compile_context>
chip_gen: v7x
topology: tpu7x:2x2x1
jax: 0.10.0
libtpu: 0.0.40
codegen_flags: <defaults>
</compile_context>

<pallas_src>
import jax
import jax.numpy as jnp
from jax import lax
from jax.experimental import pallas as pl
from jax.experimental.pallas import tpu as pltpu

# Model hyper-parameters (global constants, as in the reference file).
d_model = 32
n_heads = 4
d_k = 8
d_v = 8
LN_EPS = 1e-5  # PyTorch nn.LayerNorm default

_HDK = n_heads * d_k   # 32
_HDV = n_heads * d_v   # 32


def _mha_body(q_ref, k_ref, v_ref, mask_ref, wqkv_ref, bqkv_ref, wo_ref,
              bo_ref, gamma_ref, beta_ref, out_ref, attn_ref, *, self_attention):
    BB, S, _ = q_ref.shape

    # ---- Fused QKV projection: ONE MXU matmul for all heads and all of Q/K/V.
    # The 1/sqrt(d_k) scale is folded into the Q block of the fused weight.
    q2d = q_ref[...].reshape(BB * S, d_model).astype(jnp.float32)
    if self_attention:
        x = q2d                                              # (BB*S, d_model)
    else:
        k2d = k_ref[...].reshape(BB * S, d_model).astype(jnp.float32)
        v2d = v_ref[...].reshape(BB * S, d_model).astype(jnp.float32)
        x = jnp.concatenate([q2d, k2d, v2d], axis=-1)        # (BB*S, 3*d_model)
    qkv = jnp.dot(x, wqkv_ref[...],
                  preferred_element_type=jnp.float32) + bqkv_ref[...]

    # ---- Move heads from the lane dim into a single (BB*H) batch dim using
    # only static lane slices, a major-axis stack and leading-dim reshapes
    # (no minor-dim reshapes -> safe Mosaic lowering, no per-head matmuls).
    def split_heads(cols, dh):
        parts = [cols[:, h * dh:(h + 1) * dh].reshape(BB, S, dh)
                 for h in range(n_heads)]
        return jnp.stack(parts, axis=1).reshape(BB * n_heads, S, dh)

    q3 = split_heads(qkv[:, :_HDK], d_k)             # (BB*H, S, d_k), pre-scaled
    k3 = split_heads(qkv[:, _HDK:2 * _HDK], d_k)     # (BB*H, S, d_k)
    v3 = split_heads(qkv[:, 2 * _HDK:], d_v)         # (BB*H, S, d_v)

    # ---- All (batch, head) score matrices in one batched MXU dot.
    scores = jnp.einsum("bqd,bkd->bqk", q3, k3,
                        preferred_element_type=jnp.float32)  # (BB*H, S, S)
    scores = scores.reshape(BB, n_heads, S, S)

    # ---- Exact masked_fill semantics + softmax with exact normalization
    # (attn is a returned output -> no approximate reciprocal).
    mask4 = jnp.broadcast_to(mask_ref[...][:, None, :, :], (BB, n_heads, S, S))
    scores = jnp.where(mask4 > 0.5, jnp.float32(-1e9), scores)
    m = jnp.max(scores, axis=-1, keepdims=True)
    e = jnp.exp(scores - m)
    p4 = e / jnp.sum(e, axis=-1, keepdims=True)              # (BB, H, S, S)

    # One store per grid step, directly in the final [B, H, S, S] layout
    # (no wrapper-side transpose; lane-dense for real S >= 128).
    attn_ref[...] = p4

    # ---- All (batch, head) contexts in one batched MXU dot, then a single
    # (BB*S, H*d_v) @ (H*d_v, d_model) output projection.
    ctx3 = jnp.einsum("bqk,bkd->bqd", p4.reshape(BB * n_heads, S, S), v3,
                      preferred_element_type=jnp.float32)    # (BB*H, S, d_v)
    ctx4 = ctx3.reshape(BB, n_heads, S, d_v)
    ctx_wide = jnp.concatenate([ctx4[:, h] for h in range(n_heads)], axis=-1)
    ctx2d = ctx_wide.reshape(BB * S, _HDV)                   # (BB*S, H*d_v)

    out2d = jnp.dot(ctx2d, wo_ref[...],
                    preferred_element_type=jnp.float32) + bo_ref[...]
    out2d = out2d + q2d                                      # residual = original Q

    # ---- LayerNorm over d_model, vectorized over all BB*S rows.
    mean = jnp.mean(out2d, axis=-1, keepdims=True)
    cen = out2d - mean
    var = jnp.mean(cen * cen, axis=-1, keepdims=True)
    y = cen * lax.rsqrt(var + LN_EPS) * gamma_ref[...] + beta_ref[...]

    # Single slab store for the main output.
    out_ref[...] = y.reshape(BB, S, d_model).astype(out_ref.dtype)


def _make_mha_kernel(self_attention):
    if self_attention:
        def kernel(q_ref, mask_ref, wqkv_ref, bqkv_ref, wo_ref, bo_ref,
                   gamma_ref, beta_ref, out_ref, attn_ref):
            _mha_body(q_ref, q_ref, q_ref, mask_ref, wqkv_ref, bqkv_ref, wo_ref,
                      bo_ref, gamma_ref, beta_ref, out_ref, attn_ref,
                      self_attention=True)
    else:
        def kernel(q_ref, k_ref, v_ref, mask_ref, wqkv_ref, bqkv_ref, wo_ref,
                   bo_ref, gamma_ref, beta_ref, out_ref, attn_ref):
            _mha_body(q_ref, k_ref, v_ref, mask_ref, wqkv_ref, bqkv_ref, wo_ref,
                      bo_ref, gamma_ref, beta_ref, out_ref, attn_ref,
                      self_attention=False)
    return kernel


def _num_tensorcores_per_chip():
    """v5e/v6e have 1 TensorCore per chip, v7x has 2. Used for grid sizing."""
    try:
        info = pltpu.get_tpu_info()
        for name in ("num_cores", "num_tensorcores", "tensorcores_per_chip",
                     "num_tensor_cores", "core_count"):
            v = getattr(info, name, None)
            if isinstance(v, int) and 0 < v <= 16:
                return v
    except Exception:
        pass
    try:
        if "v7" in jax.devices()[0].device_kind.lower():
            return 2
    except Exception:
        pass
    return 1


def multi_head_attention(Q, K, V, attn_pad, params, batch_block=None):
    """Q, K, V: [B, S, d_model]; attn_pad: [B, S, S] (bool/0-1 pad mask)."""
    B, S, D = Q.shape
    assert D == d_model
    wq, bq, wk, bk, wv, bv, wo, bo, gamma, beta = params

    # Self-attention (the common BERT case): skip the lane-concat and the
    # block-diagonal (2/3 zeros) fused weight.
    self_attention = (K is Q) and (V is Q)

    # Grid sizing per chip generation:
    #   single-TC (v5e/v6e): fold all batches into one grid step (grid=(1,)).
    #   dual-TC (v7x): even grid >= 2 so the "parallel" batch axis shards
    #   across both TensorCores (never fold to grid=(1,)).
    if batch_block is None:
        n_tc = _num_tensorcores_per_chip()
        batch_block = B if n_tc <= 1 else max(1, pl.cdiv(B, n_tc))
    batch_block = max(1, min(batch_block, B))
    while B % batch_block:
        batch_block -= 1
    BB = batch_block

    # One-time param prep: fused QKV weight with 1/sqrt(d_k) folded into the
    # Q block, plus a fused bias.
    scale = 1.0 / float(d_k) ** 0.5
    if self_attention:
        w_qkv = jnp.concatenate([wq * scale, wk, wv], axis=1)   # (D, 3*H*d_k)
    else:
        # Block-diagonal fused weight supports distinct Q/K/V inputs.
        w_qkv = jnp.zeros((3 * d_model, 2 * _HDK + _HDV), jnp.float32)
        w_qkv = w_qkv.at[0:d_model, 0:_HDK].set(wq * scale)
        w_qkv = w_qkv.at[d_model:2 * d_model, _HDK:2 * _HDK].set(wk)
        w_qkv = w_qkv.at[2 * d_model:, 2 * _HDK:].set(wv)
    b_qkv = jnp.concatenate([bq * scale, bk, bv]).reshape(1, -1)

    mask = attn_pad.astype(jnp.float32)
    bo2 = bo.reshape(1, -1)
    g2 = gamma.reshape(1, -1)
    bt2 = beta.reshape(1, -1)

    def per_batch(trailing):
        zeros = (0,) * len(trailing)
        return pl.BlockSpec((BB,) + tuple(trailing), lambda b: (b,) + zeros)

    def replicated(shape):
        zeros = (0,) * len(shape)
        return pl.BlockSpec(tuple(shape), lambda b: zeros)

    if self_attention:
        inputs = (Q, mask, w_qkv, b_qkv, wo, bo2, g2, bt2)
        act_specs = [per_batch((S, D))]
    else:
        inputs = (Q, K, V, mask, w_qkv, b_qkv, wo, bo2, g2, bt2)
        act_specs = [per_batch((S, D)), per_batch((S, D)), per_batch((S, D))]

    in_specs = act_specs + [
        per_batch((S, S)),
        replicated(w_qkv.shape), replicated(b_qkv.shape),
        replicated(wo.shape), replicated(bo2.shape),
        replicated(g2.shape), replicated(bt2.shape),
    ]

    out, attn = pl.pallas_call(
        _make_mha_kernel(self_attention),
        out_shape=(
            jax.ShapeDtypeStruct((B, S, d_model), Q.dtype),
            jax.ShapeDtypeStruct((B, n_heads, S, S), jnp.float32),
        ),
        grid_spec=pltpu.PrefetchScalarGridSpec(
            num_scalar_prefetch=0,
            grid=(B // BB,),
            in_specs=in_specs,
            out_specs=[
                per_batch((S, d_model)),
                per_batch((n_heads, S, S)),
            ],
        ),
        compiler_params=pltpu.CompilerParams(
            dimension_semantics=("parallel",)),
    )(*inputs)

    return out, attn


def ref_mha(Q, K, V, attn_pad, params):
    """Pure-JAX reference mirroring the PyTorch forward."""
    wq, bq, wk, bk, wv, bv, wo, bo, gamma, beta = params
    B, S, D = Q.shape
    q = (Q @ wq + bq).reshape(B, S, n_heads, d_k).transpose(0, 2, 1, 3)
    k = (K @ wk + bk).reshape(B, S, n_heads, d_k).transpose(0, 2, 1, 3)
    v = (V @ wv + bv).reshape(B, S, n_heads, d_v).transpose(0, 2, 1, 3)
    scores = jnp.einsum("bhqd,bhkd->bhqk", q, k) / jnp.sqrt(jnp.float32(d_k))
    scores = jnp.where(attn_pad[:, None, :, :] > 0.5, -1e9, scores)
    attn = jax.nn.softmax(scores, axis=-1)
    ctx = jnp.einsum("bhqk,bhkd->bhqd", attn, v)
    ctx = ctx.transpose(0, 2, 1, 3).reshape(B, S, n_heads * d_v)
    out = ctx @ wo + bo + Q
    mean = jnp.mean(out, axis=-1, keepdims=True)
    var = jnp.mean((out - mean) ** 2, axis=-1, keepdims=True)
    out = (out - mean) * jax.lax.rsqrt(var + LN_EPS) * gamma + beta
    return out, attn


def init_params(key):
    ks = jax.random.split(key, 8)

    def lin(kw, kb, fan_in, fan_out):
        bound = 1.0 / jnp.sqrt(jnp.float32(fan_in))
        w = jax.random.uniform(kw, (fan_in, fan_out), jnp.float32, -bound, bound)
        b = jax.random.uniform(kb, (fan_out,), jnp.float32, -bound, bound)
        return w, b

    wq, bq = lin(ks[0], ks[1], d_model, d_k * n_heads)
    wk, bk = lin(ks[2], ks[3], d_model, d_k * n_heads)
    wv, bv = lin(ks[4], ks[5], d_model, d_v * n_heads)
    wo, bo = lin(ks[6], ks[7], n_heads * d_v, d_model)
    gamma = jnp.ones((d_model,), jnp.float32)
    beta = jnp.zeros((d_model,), jnp.float32)
    return (wq, bq, wk, bk, wv, bv, wo, bo, gamma, beta)


if __name__ == "__main__":
    key = jax.random.PRNGKey(0)
    k_p, k_q, k_k, k_v = jax.random.split(key, 4)

    B, S = 2, 8
    params = init_params(k_p)
    Q = jax.random.normal(k_q, (B, S, d_model), jnp.float32)
    K = jax.random.normal(k_k, (B, S, d_model), jnp.float32)
    V = jax.random.normal(k_v, (B, S, d_model), jnp.float32)
    # Pad mask: last 2 key positions of batch 1 are padding.
    attn_pad = jnp.zeros((B, S, S), jnp.float32)
    attn_pad = attn_pad.at[1, :, S - 2:].set(1.0)

    # --- Cross-attention path (distinct Q/K/V -> block-diagonal fused weight).
    out, attn = multi_head_attention(Q, K, V, attn_pad, params)
    out, attn = jax.block_until_ready((out, attn))
    out_ref, attn_ref = ref_mha(Q, K, V, attn_pad, params)
    # Exact softmax normalization + exact masked_fill -> tight tolerances.
    assert jnp.allclose(attn, attn_ref, atol=1e-3, rtol=1e-3), "attn mismatch"
    assert jnp.allclose(out, out_ref, atol=1e-3, rtol=1e-3), "output mismatch"

    # --- Self-attention path (Q is K is V -> dense fused QKV weight, no concat).
    out_s, attn_s = multi_head_attention(Q, Q, Q, attn_pad, params)
    out_s, attn_s = jax.block_until_ready((out_s, attn_s))
    out_sr, attn_sr = ref_mha(Q, Q, Q, attn_pad, params)
    assert jnp.allclose(attn_s, attn_sr, atol=1e-3, rtol=1e-3), "self-attn attn mismatch"
    assert jnp.allclose(out_s, out_sr, atol=1e-3, rtol=1e-3), "self-attn output mismatch"

    print("KERNEL_OK")
</pallas_src>

<mosaic_0001>
module attributes {stable_mosaic.version = 11 : i64} {
  func.func @kernel(%arg0: i32, %arg1: memref<2x8x32xf32, #tpu.memory_space<vmem>>, %arg2: memref<2x8x32xf32, #tpu.memory_space<vmem>>, %arg3: memref<2x8x32xf32, #tpu.memory_space<vmem>>, %arg4: memref<2x8x8xf32, #tpu.memory_space<vmem>>, %arg5: memref<96x96xf32, #tpu.memory_space<vmem>>, %arg6: memref<1x96xf32, #tpu.memory_space<vmem>>, %arg7: memref<32x32xf32, #tpu.memory_space<vmem>>, %arg8: memref<1x32xf32, #tpu.memory_space<vmem>>, %arg9: memref<1x32xf32, #tpu.memory_space<vmem>>, %arg10: memref<1x32xf32, #tpu.memory_space<vmem>>, %arg11: memref<2x8x32xf32, #tpu.memory_space<vmem>>, %arg12: memref<2x4x8x8xf32, #tpu.memory_space<vmem>>) attributes {dimension_semantics = [#tpu.dimension_semantics<parallel>], iteration_bounds = array<i64: 1>, scalar_prefetch = 0 : i64, scratch_operands = 0 : i64, tpu.core_type = #tpu.core_type<tc>, window_params = [{transform_indices = @transform_0, window_bounds = array<i64: 2, 8, 32>}, {transform_indices = @transform_1, window_bounds = array<i64: 2, 8, 32>}, {transform_indices = @transform_2, window_bounds = array<i64: 2, 8, 32>}, {transform_indices = @transform_3, window_bounds = array<i64: 2, 8, 8>}, {pipeline_mode = #tpu.pipeline_mode<synchronous>, transform_indices = @transform_4, window_bounds = array<i64: 96, 96>}, {pipeline_mode = #tpu.pipeline_mode<synchronous>, transform_indices = @transform_5, window_bounds = array<i64: 1, 96>}, {pipeline_mode = #tpu.pipeline_mode<synchronous>, transform_indices = @transform_6, window_bounds = array<i64: 32, 32>}, {pipeline_mode = #tpu.pipeline_mode<synchronous>, transform_indices = @transform_7, window_bounds = array<i64: 1, 32>}, {pipeline_mode = #tpu.pipeline_mode<synchronous>, transform_indices = @transform_8, window_bounds = array<i64: 1, 32>}, {pipeline_mode = #tpu.pipeline_mode<synchronous>, transform_indices = @transform_9, window_bounds = array<i64: 1, 32>}, {transform_indices = @transform_10, window_bounds = array<i64: 2, 8, 32>}, {transform_indices = @transform_11, window_bounds = array<i64: 2, 4, 8, 8>}]} {
    %c0 = arith.constant 0 : index
    %c0_0 = arith.constant 0 : index
    %c0_1 = arith.constant 0 : index
    %0 = vector.load %arg1[%c0, %c0_0, %c0_1] : memref<2x8x32xf32, #tpu.memory_space<vmem>>, vector<2x8x32xf32>
    %1 = vector.shape_cast %0 : vector<2x8x32xf32> to vector<16x32xf32>
    %c0_2 = arith.constant 0 : index
    %c0_3 = arith.constant 0 : index
    %c0_4 = arith.constant 0 : index
    %2 = vector.load %arg2[%c0_2, %c0_3, %c0_4] : memref<2x8x32xf32, #tpu.memory_space<vmem>>, vector<2x8x32xf32>
    %3 = vector.shape_cast %2 : vector<2x8x32xf32> to vector<16x32xf32>
    %c0_5 = arith.constant 0 : index
    %c0_6 = arith.constant 0 : index
    %c0_7 = arith.constant 0 : index
    %4 = vector.load %arg3[%c0_5, %c0_6, %c0_7] : memref<2x8x32xf32, #tpu.memory_space<vmem>>, vector<2x8x32xf32>
    %5 = vector.shape_cast %4 : vector<2x8x32xf32> to vector<16x32xf32>
    %6 = tpu.concatenate %1, %3, %5 in 1 : vector<16x32xf32>, vector<16x32xf32>, vector<16x32xf32> -> vector<16x96xf32>
    %c0_8 = arith.constant 0 : index
    %c0_9 = arith.constant 0 : index
    %7 = vector.load %arg5[%c0_8, %c0_9] : memref<96x96xf32, #tpu.memory_space<vmem>>, vector<96x96xf32>
    %cst = arith.constant dense<0.000000e+00> : vector<16x96xf32>
    %8 = tpu.matmul %6, %7, %cst {dimension_numbers = #tpu.dot_dimension_numbers<[1], [0], [0], [1], [0, 0, 1, 1], [], []>} : vector<16x96xf32>, vector<96x96xf32>, vector<16x96xf32> -> vector<16x96xf32>
    %c0_10 = arith.constant 0 : index
    %c0_11 = arith.constant 0 : index
    %9 = vector.load %arg6[%c0_10, %c0_11] : memref<1x96xf32, #tpu.memory_space<vmem>>, vector<1x96xf32>
    %10 = vector.broadcast %9 : vector<1x96xf32> to vector<16x96xf32>
    %11 = arith.addf %8, %10 : vector<16x96xf32>
    %12 = vector.extract_strided_slice %11 {offsets = [0, 0], sizes = [16, 32], strides = [1, 1]} : vector<16x96xf32> to vector<16x32xf32>
    %13 = vector.extract_strided_slice %12 {offsets = [0, 0], sizes = [16, 8], strides = [1, 1]} : vector<16x32xf32> to vector<16x8xf32>
    %14 = vector.shape_cast %13 : vector<16x8xf32> to vector<2x8x8xf32>
    %15 = vector.extract_strided_slice %12 {offsets = [0, 8], sizes = [16, 8], strides = [1, 1]} : vector<16x32xf32> to vector<16x8xf32>
    %16 = vector.shape_cast %15 : vector<16x8xf32> to vector<2x8x8xf32>
    %17 = vector.extract_strided_slice %12 {offsets = [0, 16], sizes = [16, 8], strides = [1, 1]} : vector<16x32xf32> to vector<16x8xf32>
    %18 = vector.shape_cast %17 : vector<16x8xf32> to vector<2x8x8xf32>
    %19 = vector.extract_strided_slice %12 {offsets = [0, 24], sizes = [16, 8], strides = [1, 1]} : vector<16x32xf32> to vector<16x8xf32>
    %20 = vector.shape_cast %19 : vector<16x8xf32> to vector<2x8x8xf32>
    %21 = vector.shape_cast %14 : vector<2x8x8xf32> to vector<2x1x8x8xf32>
    %22 = vector.shape_cast %16 : vector<2x8x8xf32> to vector<2x1x8x8xf32>
    %23 = vector.shape_cast %18 : vector<2x8x8xf32> to vector<2x1x8x8xf32>
    %24 = vector.shape_cast %20 : vector<2x8x8xf32> to vector<2x1x8x8xf32>
    %25 = tpu.concatenate %21, %22, %23, %24 in 1 : vector<2x1x8x8xf32>, vector<2x1x8x8xf32>, vector<2x1x8x8xf32>, vector<2x1x8x8xf32> -> vector<2x4x8x8xf32>
    %26 = vector.shape_cast %25 : vector<2x4x8x8xf32> to vector<8x8x8xf32>
    %27 = vector.extract_strided_slice %11 {offsets = [0, 32], sizes = [16, 32], strides = [1, 1]} : vector<16x96xf32> to vector<16x32xf32>
    %28 = vector.extract_strided_slice %27 {offsets = [0, 0], sizes = [16, 8], strides = [1, 1]} : vector<16x32xf32> to vector<16x8xf32>
    %29 = vector.shape_cast %28 : vector<16x8xf32> to vector<2x8x8xf32>
    %30 = vector.extract_strided_slice %27 {offsets = [0, 8], sizes = [16, 8], strides = [1, 1]} : vector<16x32xf32> to vector<16x8xf32>
    %31 = vector.shape_cast %30 : vector<16x8xf32> to vector<2x8x8xf32>
    %32 = vector.extract_strided_slice %27 {offsets = [0, 16], sizes = [16, 8], strides = [1, 1]} : vector<16x32xf32> to vector<16x8xf32>
    %33 = vector.shape_cast %32 : vector<16x8xf32> to vector<2x8x8xf32>
    %34 = vector.extract_strided_slice %27 {offsets = [0, 24], sizes = [16, 8], strides = [1, 1]} : vector<16x32xf32> to vector<16x8xf32>
    %35 = vector.shape_cast %34 : vector<16x8xf32> to vector<2x8x8xf32>
    %36 = vector.shape_cast %29 : vector<2x8x8xf32> to vector<2x1x8x8xf32>
    %37 = vector.shape_cast %31 : vector<2x8x8xf32> to vector<2x1x8x8xf32>
    %38 = vector.shape_cast %33 : vector<2x8x8xf32> to vector<2x1x8x8xf32>
    %39 = vector.shape_cast %35 : vector<2x8x8xf32> to vector<2x1x8x8xf32>
    %40 = tpu.concatenate %36, %37, %38, %39 in 1 : vector<2x1x8x8xf32>, vector<2x1x8x8xf32>, vector<2x1x8x8xf32>, vector<2x1x8x8xf32> -> vector<2x4x8x8xf32>
    %41 = vector.shape_cast %40 : vector<2x4x8x8xf32> to vector<8x8x8xf32>
    %42 = vector.extract_strided_slice %11 {offsets = [0, 64], sizes = [16, 32], strides = [1, 1]} : vector<16x96xf32> to vector<16x32xf32>
    %43 = vector.extract_strided_slice %42 {offsets = [0, 0], sizes = [16, 8], strides = [1, 1]} : vector<16x32xf32> to vector<16x8xf32>
    %44 = vector.shape_cast %43 : vector<16x8xf32> to vector<2x8x8xf32>
    %45 = vector.extract_strided_slice %42 {offsets = [0, 8], sizes = [16, 8], strides = [1, 1]} : vector<16x32xf32> to vector<16x8xf32>
    %46 = vector.shape_cast %45 : vector<16x8xf32> to vector<2x8x8xf32>
    %47 = vector.extract_strided_slice %42 {offsets = [0, 16], sizes = [16, 8], strides = [1, 1]} : vector<16x32xf32> to vector<16x8xf32>
    %48 = vector.shape_cast %47 : vector<16x8xf32> to vector<2x8x8xf32>
    %49 = vector.extract_strided_slice %42 {offsets = [0, 24], sizes = [16, 8], strides = [1, 1]} : vector<16x32xf32> to vector<16x8xf32>
    %50 = vector.shape_cast %49 : vector<16x8xf32> to vector<2x8x8xf32>
    %51 = vector.shape_cast %44 : vector<2x8x8xf32> to vector<2x1x8x8xf32>
    %52 = vector.shape_cast %46 : vector<2x8x8xf32> to vector<2x1x8x8xf32>
    %53 = vector.shape_cast %48 : vector<2x8x8xf32> to vector<2x1x8x8xf32>
    %54 = vector.shape_cast %50 : vector<2x8x8xf32> to vector<2x1x8x8xf32>
    %55 = tpu.concatenate %51, %52, %53, %54 in 1 : vector<2x1x8x8xf32>, vector<2x1x8x8xf32>, vector<2x1x8x8xf32>, vector<2x1x8x8xf32> -> vector<2x4x8x8xf32>
    %56 = vector.shape_cast %55 : vector<2x4x8x8xf32> to vector<8x8x8xf32>
    "tpu.trace_start"() <{level = 10 : i32, message = "bqd,bkd->bqk"}> : () -> ()
    %cst_12 = arith.constant dense<0.000000e+00> : vector<8x8x8xf32>
    %57 = tpu.matmul %26, %41, %cst_12 {dimension_numbers = #tpu.dot_dimension_numbers<[2], [2], [1], [1], [0, 0, 0, 1, 1, 1], [0], [0]>} : vector<8x8x8xf32>, vector<8x8x8xf32>, vector<8x8x8xf32> -> vector<8x8x8xf32>
    "tpu.trace_stop"() : () -> ()
    %58 = vector.shape_cast %57 : vector<8x8x8xf32> to vector<2x4x8x8xf32>
    %c0_13 = arith.constant 0 : index
    %c0_14 = arith.constant 0 : index
    %c0_15 = arith.constant 0 : index
    %59 = vector.load %arg4[%c0_13, %c0_14, %c0_15] : memref<2x8x8xf32, #tpu.memory_space<vmem>>, vector<2x8x8xf32>
    %60 = vector.shape_cast %59 : vector<2x8x8xf32> to vector<2x1x8x8xf32>
    %61 = vector.shape_cast %60 : vector<2x1x8x8xf32> to vector<2x1x8x8xf32>
    %62 = vector.broadcast %61 : vector<2x1x8x8xf32> to vector<2x4x8x8xf32>
    %cst_16 = arith.constant 5.000000e-01 : f32
    %63 = vector.broadcast %cst_16 : f32 to vector<2x4x8x8xf32>
    %64 = arith.cmpf ogt, %62, %63 : vector<2x4x8x8xf32>
    %cst_17 = arith.constant -1.000000e+09 : f32
    %65 = vector.broadcast %cst_17 : f32 to vector<2x4x8x8xf32>
    %66 = arith.select %64, %65, %58 : vector<2x4x8x8xi1>, vector<2x4x8x8xf32>
    %cst_18 = arith.constant dense<0xFF800000> : vector<2x4x8xf32>
    %67 = vector.multi_reduction <maximumf>, %66, %cst_18 [3] : vector<2x4x8x8xf32> to vector<2x4x8xf32>
    %68 = vector.shape_cast %67 : vector<2x4x8xf32> to vector<2x4x8x1xf32>
    %69 = vector.broadcast %68 : vector<2x4x8x1xf32> to vector<2x4x8x8xf32>
    %70 = arith.subf %66, %69 : vector<2x4x8x8xf32>
    %71 = math.exp %70 : vector<2x4x8x8xf32>
    %cst_19 = arith.constant dense<0.000000e+00> : vector<2x4x8xf32>
    %72 = vector.multi_reduction <add>, %71, %cst_19 [3] : vector<2x4x8x8xf32> to vector<2x4x8xf32>
    %73 = vector.shape_cast %72 : vector<2x4x8xf32> to vector<2x4x8x1xf32>
    %74 = vector.broadcast %73 : vector<2x4x8x1xf32> to vector<2x4x8x8xf32>
    %75 = arith.divf %71, %74 : vector<2x4x8x8xf32>
    %c0_20 = arith.constant 0 : index
    %c0_21 = arith.constant 0 : index
    %c0_22 = arith.constant 0 : index
    %c0_23 = arith.constant 0 : index
    %76 = vector.load %arg12[%c0_20, %c0_21, %c0_22, %c0_23] : memref<2x4x8x8xf32, #tpu.memory_space<vmem>>, vector<2x4x8x8xf32>
    tpu.vector_store %arg12[%c0_20, %c0_21, %c0_22, %c0_23], %75 {strides = array<i32>} : memref<2x4x8x8xf32, #tpu.memory_space<vmem>>, vector<2x4x8x8xf32>,
    %77 = vector.shape_cast %75 : vector<2x4x8x8xf32> to vector<8x8x8xf32>
    "tpu.trace_start"() <{level = 10 : i32, message = "bqk,bkd->bqd"}> : () -> ()
    %cst_24 = arith.constant dense<0.000000e+00> : vector<8x8x8xf32>
    %78 = tpu.matmul %77, %56, %cst_24 {dimension_numbers = #tpu.dot_dimension_numbers<[2], [1], [1], [2], [0, 0, 0, 1, 1, 2], [0], [0]>} : vector<8x8x8xf32>, vector<8x8x8xf32>, vector<8x8x8xf32> -> vector<8x8x8xf32>
    "tpu.trace_stop"() : () -> ()
    %79 = vector.shape_cast %78 : vector<8x8x8xf32> to vector<2x4x8x8xf32>
    %80 = vector.extract_strided_slice %79 {offsets = [0, 0, 0, 0], sizes = [2, 1, 8, 8], strides = [1, 1, 1, 1]} : vector<2x4x8x8xf32> to vector<2x1x8x8xf32>
    %81 = vector.shape_cast %80 : vector<2x1x8x8xf32> to vector<2x8x8xf32>
    %82 = vector.extract_strided_slice %79 {offsets = [0, 1, 0, 0], sizes = [2, 1, 8, 8], strides = [1, 1, 1, 1]} : vector<2x4x8x8xf32> to vector<2x1x8x8xf32>
    %83 = vector.shape_cast %82 : vector<2x1x8x8xf32> to vector<2x8x8xf32>
    %84 = vector.extract_strided_slice %79 {offsets = [0, 2, 0, 0], sizes = [2, 1, 8, 8], strides = [1, 1, 1, 1]} : vector<2x4x8x8xf32> to vector<2x1x8x8xf32>
    %85 = vector.shape_cast %84 : vector<2x1x8x8xf32> to vector<2x8x8xf32>
    %86 = vector.extract_strided_slice %79 {offsets = [0, 3, 0, 0], sizes = [2, 1, 8, 8], strides = [1, 1, 1, 1]} : vector<2x4x8x8xf32> to vector<2x1x8x8xf32>
    %87 = vector.shape_cast %86 : vector<2x1x8x8xf32> to vector<2x8x8xf32>
    %88 = tpu.concatenate %81, %83, %85, %87 in 2 : vector<2x8x8xf32>, vector<2x8x8xf32>, vector<2x8x8xf32>, vector<2x8x8xf32> -> vector<2x8x32xf32>
    %89 = vector.shape_cast %88 : vector<2x8x32xf32> to vector<16x32xf32>
    %c0_25 = arith.constant 0 : index
    %c0_26 = arith.constant 0 : index
    %90 = vector.load %arg7[%c0_25, %c0_26] : memref<32x32xf32, #tpu.memory_space<vmem>>, vector<32x32xf32>
    %cst_27 = arith.constant dense<0.000000e+00> : vector<16x32xf32>
    %91 = tpu.matmul %89, %90, %cst_27 {dimension_numbers = #tpu.dot_dimension_numbers<[1], [0], [0], [1], [0, 0, 1, 1], [], []>} : vector<16x32xf32>, vector<32x32xf32>, vector<16x32xf32> -> vector<16x32xf32>
    %c0_28 = arith.constant 0 : index
    %c0_29 = arith.constant 0 : index
    %92 = vector.load %arg8[%c0_28, %c0_29] : memref<1x32xf32, #tpu.memory_space<vmem>>, vector<1x32xf32>
    %93 = vector.broadcast %92 : vector<1x32xf32> to vector<16x32xf32>
    %94 = arith.addf %91, %93 : vector<16x32xf32>
    %95 = arith.addf %94, %1 : vector<16x32xf32>
    %cst_30 = arith.constant dense<0.000000e+00> : vector<16xf32>
    %96 = vector.multi_reduction <add>, %95, %cst_30 [1] : vector<16x32xf32> to vector<16xf32>
    %97 = vector.shape_cast %96 : vector<16xf32> to vector<16x1xf32>
    %cst_31 = arith.constant 3.200000e+01 : f32
    %98 = vector.broadcast %cst_31 : f32 to vector<16x1xf32>
    %99 = arith.divf %97, %98 : vector<16x1xf32>
    %100 = vector.broadcast %99 : vector<16x1xf32> to vector<16x32xf32>
    %101 = arith.subf %95, %100 : vector<16x32xf32>
    %102 = arith.mulf %101, %101 : vector<16x32xf32>
    %cst_32 = arith.constant dense<0.000000e+00> : vector<16xf32>
    %103 = vector.multi_reduction <add>, %102, %cst_32 [1] : vector<16x32xf32> to vector<16xf32>
    %104 = vector.shape_cast %103 : vector<16xf32> to vector<16x1xf32>
    %cst_33 = arith.constant 3.200000e+01 : f32
    %105 = vector.broadcast %cst_33 : f32 to vector<16x1xf32>
    %106 = arith.divf %104, %105 : vector<16x1xf32>
    %cst_34 = arith.constant 9.99999974E-6 : f32
    %107 = vector.broadcast %cst_34 : f32 to vector<16x1xf32>
    %108 = arith.addf %106, %107 : vector<16x1xf32>
    %109 = math.rsqrt %108 : vector<16x1xf32>
    %110 = vector.broadcast %109 : vector<16x1xf32> to vector<16x32xf32>
    %111 = arith.mulf %101, %110 : vector<16x32xf32>
    %c0_35 = arith.constant 0 : index
    %c0_36 = arith.constant 0 : index
    %112 = vector.load %arg9[%c0_35, %c0_36] : memref<1x32xf32, #tpu.memory_space<vmem>>, vector<1x32xf32>
    %113 = vector.broadcast %112 : vector<1x32xf32> to vector<16x32xf32>
    %114 = arith.mulf %111, %113 : vector<16x32xf32>
    %c0_37 = arith.constant 0 : index
    %c0_38 = arith.constant 0 : index
    %115 = vector.load %arg10[%c0_37, %c0_38] : memref<1x32xf32, #tpu.memory_space<vmem>>, vector<1x32xf32>
    %116 = vector.broadcast %115 : vector<1x32xf32> to vector<16x32xf32>
    %117 = arith.addf %114, %116 : vector<16x32xf32>
    %118 = vector.shape_cast %117 : vector<16x32xf32> to vector<2x8x32xf32>
    %c0_39 = arith.constant 0 : index
    %c0_40 = arith.constant 0 : index
    %c0_41 = arith.constant 0 : index
    %119 = vector.load %arg11[%c0_39, %c0_40, %c0_41] : memref<2x8x32xf32, #tpu.memory_space<vmem>>, vector<2x8x32xf32>
    tpu.vector_store %arg11[%c0_39, %c0_40, %c0_41], %118 {strides = array<i32>} : memref<2x8x32xf32, #tpu.memory_space<vmem>>, vector<2x8x32xf32>,
    return
  }
  func.func @transform_0(%arg0: i32) -> (i32, i32, i32) {
    %c0_i32 = arith.constant 0 : i32
    %c0_i32_0 = arith.constant 0 : i32
    %c0_i32_1 = arith.constant 0 : i32
    return %arg0, %c0_i32, %c0_i32_0 : i32, i32, i32
  }
  func.func @transform_1(%arg0: i32) -> (i32, i32, i32) {
    %c0_i32 = arith.constant 0 : i32
    %c0_i32_0 = arith.constant 0 : i32
    %c0_i32_1 = arith.constant 0 : i32
    return %arg0, %c0_i32, %c0_i32_0 : i32, i32, i32
  }
  func.func @transform_2(%arg0: i32) -> (i32, i32, i32) {
    %c0_i32 = arith.constant 0 : i32
    %c0_i32_0 = arith.constant 0 : i32
    %c0_i32_1 = arith.constant 0 : i32
    return %arg0, %c0_i32, %c0_i32_0 : i32, i32, i32
  }
  func.func @transform_3(%arg0: i32) -> (i32, i32, i32) {
    %c0_i32 = arith.constant 0 : i32
    %c0_i32_0 = arith.constant 0 : i32
    %c0_i32_1 = arith.constant 0 : i32
    return %arg0, %c0_i32, %c0_i32_0 : i32, i32, i32
  }
  func.func @transform_4(%arg0: i32) -> (i32, i32) {
    %c0_i32 = arith.constant 0 : i32
    %c0_i32_0 = arith.constant 0 : i32
    %c0_i32_1 = arith.constant 0 : i32
    return %c0_i32, %c0_i32_0 : i32, i32
  }
  func.func @transform_5(%arg0: i32) -> (i32, i32) {
    %c0_i32 = arith.constant 0 : i32
    %c0_i32_0 = arith.constant 0 : i32
    %c0_i32_1 = arith.constant 0 : i32
    return %c0_i32, %c0_i32_0 : i32, i32
  }
  func.func @transform_6(%arg0: i32) -> (i32, i32) {
    %c0_i32 = arith.constant 0 : i32
    %c0_i32_0 = arith.constant 0 : i32
    %c0_i32_1 = arith.constant 0 : i32
    return %c0_i32, %c0_i32_0 : i32, i32
  }
  func.func @transform_7(%arg0: i32) -> (i32, i32) {
    %c0_i32 = arith.constant 0 : i32
    %c0_i32_0 = arith.constant 0 : i32
    %c0_i32_1 = arith.constant 0 : i32
    return %c0_i32, %c0_i32_0 : i32, i32
  }
  func.func @transform_8(%arg0: i32) -> (i32, i32) {
    %c0_i32 = arith.constant 0 : i32
    %c0_i32_0 = arith.constant 0 : i32
    %c0_i32_1 = arith.constant 0 : i32
    return %c0_i32, %c0_i32_0 : i32, i32
  }
  func.func @transform_9(%arg0: i32) -> (i32, i32) {
    %c0_i32 = arith.constant 0 : i32
    %c0_i32_0 = arith.constant 0 : i32
    %c0_i32_1 = arith.constant 0 : i32
    return %c0_i32, %c0_i32_0 : i32, i32
  }
  func.func @transform_10(%arg0: i32) -> (i32, i32, i32) {
    %c0_i32 = arith.constant 0 : i32
    %c0_i32_0 = arith.constant 0 : i32
    %c0_i32_1 = arith.constant 0 : i32
    return %arg0, %c0_i32, %c0_i32_0 : i32, i32, i32
  }
  func.func @transform_11(%arg0: i32) -> (i32, i32, i32, i32) {
    %c0_i32 = arith.constant 0 : i32
    %c0_i32_0 = arith.constant 0 : i32
    %c0_i32_1 = arith.constant 0 : i32
    %c0_i32_2 = arith.constant 0 : i32
    return %arg0, %c0_i32, %c0_i32_0, %c0_i32_1 : i32, i32, i32, i32
  }
}

</mosaic_0001>

<llo_original>
// kernel: tpu_custom_call.1
$region0: #{tpu_custom_call.1}
  #allocation0 [shape = 'u32[]', space=smem, size = 0x4, offset = 0x4, fixed_abs, tag = 'smem constant byte address 0x4 - core index']
  #allocation1 [shape = 'u32[144,128]{1,0:T(1,128)}', space=vmem, size = 0x12000, scoped, tag = 'internal scratch']
  %s0 = inlined_call_operand.hbm [shape: f32[2,8,32], index: 0, kind: input, shape index: {}]
  %s1 = inlined_call_operand.hbm [shape: f32[2,8,32], index: 1, kind: input, shape index: {}]
  %s2 = inlined_call_operand.hbm [shape: f32[2,8,32], index: 2, kind: input, shape index: {}]
  %s3 = inlined_call_operand.hbm [shape: f32[2,8,8], index: 3, kind: input, shape index: {}]
  %s4 = inlined_call_operand.hbm [shape: f32[96,96], index: 4, kind: input, shape index: {}]
  %s5 = inlined_call_operand.vmem [shape: f32[1,96], index: 5, kind: input, shape index: {}]
  %s6 = inlined_call_operand.hbm [shape: f32[32,32], index: 6, kind: input, shape index: {}]
  %s7 = inlined_call_operand.vmem [shape: f32[1,32], index: 7, kind: input, shape index: {}]
  %s8 = inlined_call_operand.vmem [shape: f32[1,32], index: 8, kind: input, shape index: {}]
  %s9 = inlined_call_operand.vmem [shape: f32[1,32], index: 9, kind: input, shape index: {}]
  %s10 = inlined_call_operand.hbm [shape: f32[2,8,32], index: 10, kind: output, shape index: {0}]
  %s11 = inlined_call_operand.hbm [shape: f32[2,4,8,8], index: 11, kind: output, shape index: {1}]
  %12 = xla_tuple %s10, %s11
  %s13 = sld [smem:[#allocation0]]
  $region82: #{tpu_custom_call.1} parent=0
    _
  %s15 = ssub.s32 1, %s13
  %s16 = scalar_select 0, %s15, %s13
  $region1: #{tpu_custom_call.1} parent=0
    #allocation2 [shape = 'u8[8192]{0}', space=vmem, size = 0x2000, scoped, tag = 'input window, operand 0, single buffered']
    #allocation3 [shape = 's32[1]{0}', space=sflag, size = 0x4, scoped, tag = 'scoped memory for tpu_custom_call.1']
    #allocation4 [shape = 's32[1]{0}', space=sflag, size = 0x4, scoped, tag = 'scoped memory for tpu_custom_call.1']
    #allocation5 [shape = 'u8[8192]{0}', space=vmem, size = 0x2000, scoped, tag = 'input window, operand 1, single buffered']
    #allocation6 [shape = 's32[1]{0}', space=sflag, size = 0x4, scoped, tag = 'scoped memory for tpu_custom_call.1']
    #allocation7 [shape = 'u8[8192]{0}', space=vmem, size = 0x2000, scoped, tag = 'input window, operand 2, single buffered']
    #allocation8 [shape = 'u8[8192]{0}', space=vmem, size = 0x2000, scoped, tag = 'input window, operand 3, single buffered']
    #allocation9 [shape = 's32[1]{0}', space=sflag, size = 0x4, scoped, tag = 'scoped memory for tpu_custom_call.1']
    #allocation10 [shape = 'u8[49152]{0}', space=vmem, size = 0xc000, scoped, tag = 'input window, operand 4, single buffered']
    #allocation11 [shape = 'u8[16384]{0}', space=vmem, size = 0x4000, scoped, tag = 'input window, operand 6, single buffered']
    #allocation12 [shape = 's32[1]{0}', space=sflag, size = 0x4, scoped, tag = 'scoped memory for tpu_custom_call.1']
    #allocation13 [shape = 'u8[8192]{0}', space=vmem, size = 0x2000, scoped, tag = 'output window, operand 0, single buffered']
    #allocation14 [shape = 'u8[32768]{0}', space=vmem, size = 0x8000, scoped, tag = 'output window, operand 1, single buffered']
    #allocation15 [shape = 's32[1]{0}', space=sflag, size = 0x4, scoped, tag = 'scoped memory for tpu_custom_call.1']
    %17 = vsyncpa [#allocation3], 0
    %18 = vsyncpa [#allocation6], 0
    %19 = vsyncpa [#allocation9], 0
    %20 = vsyncpa [#allocation12], 0
    %21 = vsyncpa [#allocation4], 0
    %22 = vsyncpa [#allocation15], 0
    // Predicated region
    $region2: #{tpu_custom_call.1} parent=1 // pred_check
      _
    $region3: #{tpu_custom_call.1} parent=1 // pred_check_branch
      %24 = sbr.rel (0) target = $region5
    $region4: #{tpu_custom_call.1} parent=1 // pred_region
      %s26 = ssub.s32 256, 256
      %27 = vsyncadd [#allocation3], %s26
      %s28 = sshll.u32 [#allocation2], 4
      %s29 = int_to_ptr.vmem [resolvable:$true] %s28
      %34 = dma.hbm_to_vmem [thread:$0]  %s0, 256, %s29, [#allocation3], 128, 128, 8
    $region5: #{tpu_custom_call.1} parent=1 // pred_fallthru
      _
    // Predicated region
    $region6: #{tpu_custom_call.1} parent=1 // pred_check
      _
    $region7: #{tpu_custom_call.1} parent=1 // pred_check_branch
      %36 = sbr.rel (0) target = $region9
    $region8: #{tpu_custom_call.1} parent=1 // pred_region
      %s38 = ssub.s32 256, 256
      %39 = vsyncadd [#allocation6], %s38
      %s40 = sshll.u32 [#allocation5], 4
      %s41 = int_to_ptr.vmem [resolvable:$true] %s40
      %46 = dma.hbm_to_vmem [thread:$0]  %s1, 256, %s41, [#allocation6], 128, 128, 8
    $region9: #{tpu_custom_call.1} parent=1 // pred_fallthru
      _
    // Predicated region
    $region10: #{tpu_custom_call.1} parent=1 // pred_check
      _
    $region11: #{tpu_custom_call.1} parent=1 // pred_check_branch
      %48 = sbr.rel (0) target = $region13
    $region12: #{tpu_custom_call.1} parent=1 // pred_region
      %s50 = ssub.s32 256, 256
      %51 = vsyncadd [#allocation6], %s50
      %s52 = sshll.u32 [#allocation7], 4
      %s53 = int_to_ptr.vmem [resolvable:$true] %s52
      %58 = dma.hbm_to_vmem [thread:$0]  %s2, 256, %s53, [#allocation6], 128, 128, 8
    $region13: #{tpu_custom_call.1} parent=1 // pred_fallthru
      _
    // Predicated region
    $region14: #{tpu_custom_call.1} parent=1 // pred_check
      _
    $region15: #{tpu_custom_call.1} parent=1 // pred_check_branch
      %60 = sbr.rel (0) target = $region17
    $region16: #{tpu_custom_call.1} parent=1 // pred_region
      %s62 = ssub.s32 256, 256
      %63 = vsyncadd [#allocation9], %s62
      %s64 = sshll.u32 [#allocation8], 4
      %s65 = int_to_ptr.vmem [resolvable:$true] %s64
      %70 = dma.hbm_to_vmem [thread:$0]  %s3, 256, %s65, [#allocation9], 128, 128, 8
    $region17: #{tpu_custom_call.1} parent=1 // pred_fallthru
      _
    // Predicated region
    $region18: #{tpu_custom_call.1} parent=1 // pred_check
      _
    $region19: #{tpu_custom_call.1} parent=1 // pred_check_branch
      %72 = sbr.rel (0) target = $region21
    $region20: #{tpu_custom_call.1} parent=1 // pred_region
      %s74 = ssub.s32 1536, 1536
      %75 = vsyncadd [#allocation9], %s74
      %s76 = sshll.u32 [#allocation10], 4
      %s77 = int_to_ptr.vmem [resolvable:$true] %s76
      %82 = dma.hbm_to_vmem [thread:$0]  %s4, 1536, %s77, [#allocation9], 128, 128, 8
    $region21: #{tpu_custom_call.1} parent=1 // pred_fallthru
      _
    // Predicated region
    $region22: #{tpu_custom_call.1} parent=1 // pred_check
      _
    $region23: #{tpu_custom_call.1} parent=1 // pred_check_branch
      %84 = sbr.rel (0) target = $region25
    $region24: #{tpu_custom_call.1} parent=1 // pred_region
      _
    $region25: #{tpu_custom_call.1} parent=1 // pred_fallthru
      _
    // Predicated region
    $region26: #{tpu_custom_call.1} parent=1 // pred_check
      _
    $region27: #{tpu_custom_call.1} parent=1 // pred_check_branch
      %86 = sbr.rel (0) target = $region29
    $region28: #{tpu_custom_call.1} parent=1 // pred_region
      %s88 = ssub.s32 512, 512
      %89 = vsyncadd [#allocation12], %s88
      %s90 = sshll.u32 [#allocation11], 4
      %s91 = int_to_ptr.vmem [resolvable:$true] %s90
      %96 = dma.hbm_to_vmem [thread:$0]  %s6, 512, %s91, [#allocation12], 128, 128, 8
    $region29: #{tpu_custom_call.1} parent=1 // pred_fallthru
      _
    // Predicated region
    $region30: #{tpu_custom_call.1} parent=1 // pred_check
      _
    $region31: #{tpu_custom_call.1} parent=1 // pred_check_branch
      %98 = sbr.rel (0) target = $region33
    $region32: #{tpu_custom_call.1} parent=1 // pred_region
      _
    $region33: #{tpu_custom_call.1} parent=1 // pred_fallthru
      _
    // Predicated region
    $region34: #{tpu_custom_call.1} parent=1 // pred_check
      _
    $region35: #{tpu_custom_call.1} parent=1 // pred_check_branch
      %100 = sbr.rel (0) target = $region37
    $region36: #{tpu_custom_call.1} parent=1 // pred_region
      _
    $region37: #{tpu_custom_call.1} parent=1 // pred_fallthru
      _
    // Predicated region
    $region38: #{tpu_custom_call.1} parent=1 // pred_check
      _
    $region39: #{tpu_custom_call.1} parent=1 // pred_check_branch
      %102 = sbr.rel (0) target = $region41
    $region40: #{tpu_custom_call.1} parent=1 // pred_region
      _
    $region41: #{tpu_custom_call.1} parent=1 // pred_fallthru
      _
    // Predicated region
    $region42: #{tpu_custom_call.1} parent=1 // pred_check
      _
    $region43: #{tpu_custom_call.1} parent=1 // pred_check_branch
      %104 = sbr.rel (0) target = $region45
    $region44: #{tpu_custom_call.1} parent=1 // pred_region
      %105 = dma.done [#allocation3], 256
    $region45: #{tpu_custom_call.1} parent=1 // pred_fallthru
      _
    // Predicated region
    $region46: #{tpu_custom_call.1} parent=1 // pred_check
      _
    $region47: #{tpu_custom_call.1} parent=1 // pred_check_branch
      %107 = sbr.rel (0) target = $region49
    $region48: #{tpu_custom_call.1} parent=1 // pred_region
      %108 = dma.done [#allocation6], 256
    $region49: #{tpu_custom_call.1} parent=1 // pred_fallthru
      _
    // Predicated region
    $region50: #{tpu_custom_call.1} parent=1 // pred_check
      _
    $region51: #{tpu_custom_call.1} parent=1 // pred_check_branch
      %110 = sbr.rel (0) target = $region53
    $region52: #{tpu_custom_call.1} parent=1 // pred_region
      %111 = dma.done [#allocation6], 256
    $region53: #{tpu_custom_call.1} parent=1 // pred_fallthru
      _
    // Predicated region
    $region54: #{tpu_custom_call.1} parent=1 // pred_check
      _
    $region55: #{tpu_custom_call.1} parent=1 // pred_check_branch
      %113 = sbr.rel (0) target = $region57
    $region56: #{tpu_custom_call.1} parent=1 // pred_region
      %114 = dma.done [#allocation9], 256
    $region57: #{tpu_custom_call.1} parent=1 // pred_fallthru
      _
    // Predicated region
    $region58: #{tpu_custom_call.1} parent=1 // pred_check
      _
    $region59: #{tpu_custom_call.1} parent=1 // pred_check_branch
      %116 = sbr.rel (0) target = $region61
    $region60: #{tpu_custom_call.1} parent=1 // pred_region
      %117 = dma.done [#allocation9], 1536
    $region61: #{tpu_custom_call.1} parent=1 // pred_fallthru
      _
    // Predicated region
    $region62: #{tpu_custom_call.1} parent=1 // pred_check
      _
    $region63: #{tpu_custom_call.1} parent=1 // pred_check_branch
      %119 = sbr.rel (0) target = $region65
    $region64: #{tpu_custom_call.1} parent=1 // pred_region
      %120 = dma.done [#allocation12], 512
    $region65: #{tpu_custom_call.1} parent=1 // pred_fallthru
      _
    %v121 = vld [vmem:[#allocation2] sm:$0xff]
    %v122 = vld [vmem:[#allocation2 + $0x8] sm:$0xff]
    %v123 = vld [vmem:[#allocation5] sm:$0xff]
    %v124 = vld [vmem:[#allocation5 + $0x8] sm:$0xff]
    %v125 = vld [vmem:[#allocation7] sm:$0xff]
    %v126 = vld [vmem:[#allocation7 + $0x8] sm:$0xff]
    %129 = vrot.lane.b32.xlu0 %v123, 32
    %v130 = vpop.permute.xlu0 %129
    %131 = vrot.lane.b32.xlu0 %v124, 32
    %v132 = vpop.permute.xlu0 %131
    %137 = vrot.lane.b32.xlu0 %v125, 64
    %v138 = vpop.permute.xlu0 %137
    %139 = vrot.lane.b32.xlu0 %v126, 64
    %v140 = vpop.permute.xlu0 %139
    %vm143 = vcmask 261120
    %v144 = vsel %vm143, %v121, %v130
    %v145 = vsel %vm143, %v122, %v132
    %vm146 = vcmask 523264
    %v147 = vsel %vm146, %v144, %v138
    %v148 = vsel %vm146, %v145, %v140
    %v149 = vld [vmem:[#allocation10] sm:$0xff]
    %v150 = vld [vmem:[#allocation10 + $0x8] sm:$0xff]
    %v151 = vld [vmem:[#allocation10 + $0x10] sm:$0xff]
    %v152 = vld [vmem:[#allocation10 + $0x18] sm:$0xff]
    %v153 = vld [vmem:[#allocation10 + $0x20] sm:$0xff]
    %v154 = vld [vmem:[#allocation10 + $0x28] sm:$0xff]
    %v155 = vld [vmem:[#allocation10 + $0x30] sm:$0xff]
    %v156 = vld [vmem:[#allocation10 + $0x38] sm:$0xff]
    %v157 = vld [vmem:[#allocation10 + $0x40] sm:$0xff]
    %v158 = vld [vmem:[#allocation10 + $0x48] sm:$0xff]
    %v159 = vld [vmem:[#allocation10 + $0x50] sm:$0xff]
    %v160 = vld [vmem:[#allocation10 + $0x58] sm:$0xff]
    %v161 = vld [vmem:[%s5] sm:$0x1]
    %v163 = vlaneseq
    %v164 = vshrl.u32 %v163, 7
    %v165 = vsub.s32 0, %v164
    %v166 = vrot.slane %v161, %v165
    %vm168 = vcmask 785408
    %v170 = vsel %vm168, %v147, 0
    %v173 = vsel %vm168, %v148, 0
    %175 = vmatprep.subr.mxu0 0.0
    %176 = vmatpush1.msra.mxu0 %v149
    %177 = vmatprep.subr.mxu0 0.0
    %178 = vmatpush1.msra.mxu0 %v150
    %179 = vmatprep.subr.mxu0 0.0
    %180 = vmatpush1.msra.mxu0 %v151
    %181 = vmatprep.subr.mxu0 0.0
    %182 = vmatpush1.msra.mxu0 %v152
    %183 = vmatprep.subr.mxu0 0.0
    %184 = vmatpush1.msra.mxu0 %v153
    %185 = vmatprep.subr.mxu0 0.0
    %186 = vmatpush1.msra.mxu0 %v154
    %187 = vmatprep.subr.mxu0 0.0
    %188 = vmatpush1.msra.mxu0 %v155
    %189 = vmatprep.subr.mxu0 0.0
    %190 = vmatpush1.msra.mxu0 %v156
    %191 = vmatprep.subr.mxu0 0.0
    %192 = vmatpush1.msra.mxu0 %v157
    %193 = vmatprep.subr.mxu0 0.0
    %194 = vmatpush1.msra.mxu0 %v158
    %195 = vmatprep.subr.mxu0 0.0
    %196 = vmatpush1.msra.mxu0 %v159
    %197 = vmatprep.subr.mxu0 0.0
    %198 = vmatpush1.msra.mxu0 %v160
    %199 = vmatprep.subr.mxu0 0.0
    %200 = vmatpush1.msra.mxu0 0.0
    %201 = vmatprep.subr.mxu0 0.0
    %202 = vmatpush1.msra.mxu0 0.0
    %203 = vmatprep.subr.mxu0 0.0
    %204 = vmatpush1.msra.mxu0 0.0
    %205 = vmatprep.subr.mxu0 0.0
    %206 = vmatpush1.msra.mxu0 0.0
    %207 = vmatprep.subr.mxu0 0.0
    %208 = vmatpush1.msra.mxu0 0.0
    %209 = vmatprep.subr.mxu0 0.0
    %210 = vmatpush1.msra.mxu0 0.0
    %211 = vmatprep.subr.mxu0 0.0
    %212 = vmatpush1.msra.mxu0 0.0
    %213 = vmatprep.subr.mxu0 0.0
    %214 = vmatpush1.msra.mxu0 0.0
    %215 = vmatprep.subr.mxu0 0.0
    %216 = vmatpush1.msra.mxu0 0.0
    %217 = vmatprep.subr.mxu0 0.0
    %218 = vmatpush1.msra.mxu0 0.0
    %219 = vmatprep.subr.mxu0 0.0
    %220 = vmatpush1.msra.mxu0 0.0
    %221 = vmatprep.subr.mxu0 0.0
    %222 = vmatpush1.msra.mxu0 0.0
    %223 = vmatprep.subr.mxu0 0.0
    %224 = vmatpush1.msra.mxu0 0.0
    %225 = vmatprep.subr.mxu0 0.0
    %226 = vmatpush1.msra.mxu0 0.0
    %227 = vmatprep.subr.mxu0 0.0
    %228 = vmatpush1.msra.mxu0 0.0
    %229 = vmatprep.subr.mxu0 0.0
    %230 = vmatpush1.msra.mxu0 0.0
    %231 = vmatprep.subr.mxu0 0.0
    %232 = vmatpush1.msra.mxu0 0.0
    %233 = vmatprep.subr.mxu0 0.0
    %234 = vmatpush1.msra.mxu0 0.0
    %235 = vmatprep.subr.mxu0 0.0
    %236 = vmatpush1.msra.mxu0 0.0
    %237 = vmatprep.subr.mxu0 0.0
    %238 = vmatpush1.msra.mxu0 0.0
    %239 = vmatprep.mubr.f32.mxu0 0.0
    %240 = vmatmul.mubr.f32.gmra.mrb[0].mxu0 %v170
    %v241 = vpop.f32.mrb[0].mxu0
    %v242 = vadd.f32 %v166, %v241
    %v243 = vpop.f32.mrb[0].mxu0
    %244 = vmatprep.mubr.f32.mxu0 0.0
    %245 = vmatmul.mubr.f32.gmra.mrb[0].mxu0 %v173
    %v246 = vpop.f32.mrb[0].mxu0
    %v247 = vadd.f32 %v166, %v246
    %v248 = vpop.f32.mrb[0].mxu0
    %249 = vdwg.mxu0
    %252 = vrot.lane.b32.xlu0 %v242, 120
    %v253 = vpop.permute.xlu0 %252
    %254 = vrot.lane.b32.xlu0 %v247, 120
    %v255 = vpop.permute.xlu0 %254
    %256 = vrot.lane.b32.xlu0 %v242, 112
    %v257 = vpop.permute.xlu0 %256
    %258 = vrot.lane.b32.xlu0 %v247, 112
    %v259 = vpop.permute.xlu0 %258
    %260 = vrot.lane.b32.xlu0 %v242, 104
    %v261 = vpop.permute.xlu0 %260
    %262 = vrot.lane.b32.xlu0 %v247, 104
    %v263 = vpop.permute.xlu0 %262
    %264 = vrot.lane.b32.xlu0 %v242, 96
    %v265 = vpop.permute.xlu0 %264
    %vm266 = vcmask 64512
    %v267 = vsel %vm266, %v242, 0
    %v269 = vsel %vm266, %v265, 0
    %271 = vmatprep.subr.mxu0 0.0
    %272 = vmatpush1.xpose.msra.mxu0 %v269
    %273 = vmatprep.subr.mxu0 0.0
    %274 = vmatpush1.xpose.msra.mxu0 0.0
    %275 = vmatprep.subr.mxu0 0.0
    %276 = vmatpush1.xpose.msra.mxu0 0.0
    %277 = vmatprep.subr.mxu0 0.0
    %278 = vmatpush1.xpose.msra.mxu0 0.0
    %279 = vmatprep.subr.mxu0 0.0
    %280 = vmatpush1.xpose.msra.mxu0 0.0
    %281 = vmatprep.subr.mxu0 0.0
    %282 = vmatpush1.xpose.msra.mxu0 0.0
    %283 = vmatprep.subr.mxu0 0.0
    %284 = vmatpush1.xpose.msra.mxu0 0.0
    %285 = vmatprep.subr.mxu0 0.0
    %286 = vmatpush1.xpose.msra.mxu0 0.0
    %287 = vmatprep.subr.mxu0 0.0
    %288 = vmatpush1.xpose.msra.mxu0 0.0
    %289 = vmatprep.subr.mxu0 0.0
    %290 = vmatpush1.xpose.msra.mxu0 0.0
    %291 = vmatprep.subr.mxu0 0.0
    %292 = vmatpush1.xpose.msra.mxu0 0.0
    %293 = vmatprep.subr.mxu0 0.0
    %294 = vmatpush1.xpose.msra.mxu0 0.0
    %295 = vmatprep.subr.mxu0 0.0
    %296 = vmatpush1.xpose.msra.mxu0 0.0
    %297 = vmatprep.subr.mxu0 0.0
    %298 = vmatpush1.xpose.msra.mxu0 0.0
    %299 = vmatprep.subr.mxu0 0.0
    %300 = vmatpush1.xpose.msra.mxu0 0.0
    %301 = vmatprep.subr.mxu0 0.0
    %302 = vmatpush1.xpose.msra.mxu0 0.0
    %303 = vmatprep.subr.mxu0 0.0
    %304 = vmatpush1.xpose.msra.mxu0 0.0
    %305 = vmatprep.subr.mxu0 0.0
    %306 = vmatpush1.xpose.msra.mxu0 0.0
    %307 = vmatprep.subr.mxu0 0.0
    %308 = vmatpush1.xpose.msra.mxu0 0.0
    %309 = vmatprep.subr.mxu0 0.0
    %310 = vmatpush1.xpose.msra.mxu0 0.0
    %311 = vmatprep.subr.mxu0 0.0
    %312 = vmatpush1.xpose.msra.mxu0 0.0
    %313 = vmatprep.subr.mxu0 0.0
    %314 = vmatpush1.xpose.msra.mxu0 0.0
    %315 = vmatprep.subr.mxu0 0.0
    %316 = vmatpush1.xpose.msra.mxu0 0.0
    %317 = vmatprep.subr.mxu0 0.0
    %318 = vmatpush1.xpose.msra.mxu0 0.0
    %319 = vmatprep.subr.mxu0 0.0
    %320 = vmatpush1.xpose.msra.mxu0 0.0
    %321 = vmatprep.subr.mxu0 0.0
    %322 = vmatpush1.xpose.msra.mxu0 0.0
    %323 = vmatprep.subr.mxu0 0.0
    %324 = vmatpush1.xpose.msra.mxu0 0.0
    %325 = vmatprep.subr.mxu0 0.0
    %326 = vmatpush1.xpose.msra.mxu0 0.0
    %327 = vmatprep.subr.mxu0 0.0
    %328 = vmatpush1.xpose.msra.mxu0 0.0
    %329 = vmatprep.subr.mxu0 0.0
    %330 = vmatpush1.xpose.msra.mxu0 0.0
    %331 = vmatprep.subr.mxu0 0.0
    %332 = vmatpush1.xpose.msra.mxu0 0.0
    %333 = vmatprep.subr.mxu0 0.0
    %334 = vmatpush1.xpose.msra.mxu0 0.0
    %335 = vmatprep.mubr.f32.mxu0 0.0
    %336 = vmatmul.mubr.f32.gmra.mrb[0].mxu0 %v267
    %v337 = vpop.f32.mrb[0].mxu0
    %v338 = vadd.f32 0.0, %v337
    %v339 = vpop.f32.mrb[0].mxu0
    %340 = vdwg.mxu0
    %341 = vrot.lane.b32.xlu0 %v253, 96
    %v342 = vpop.permute.xlu0 %341
    %v343 = vsel %vm266, %v253, 0
    %v345 = vsel %vm266, %v342, 0
    %347 = vmatprep.subr.mxu0 0.0
    %348 = vmatpush1.xpose.msra.mxu0 %v345
    %349 = vmatprep.subr.mxu0 0.0
    %350 = vmatpush1.xpose.msra.mxu0 0.0
    %351 = vmatprep.subr.mxu0 0.0
    %352 = vmatpush1.xpose.msra.mxu0 0.0
    %353 = vmatprep.subr.mxu0 0.0
    %354 = vmatpush1.xpose.msra.mxu0 0.0
    %355 = vmatprep.subr.mxu0 0.0
    %356 = vmatpush1.xpose.msra.mxu0 0.0
    %357 = vmatprep.subr.mxu0 0.0
    %358 = vmatpush1.xpose.msra.mxu0 0.0
    %359 = vmatprep.subr.mxu0 0.0
    %360 = vmatpush1.xpose.msra.mxu0 0.0
    %361 = vmatprep.subr.mxu0 0.0
    %362 = vmatpush1.xpose.msra.mxu0 0.0
    %363 = vmatprep.subr.mxu0 0.0
    %364 = vmatpush1.xpose.msra.mxu0 0.0
    %365 = vmatprep.subr.mxu0 0.0
    %366 = vmatpush1.xpose.msra.mxu0 0.0
    %367 = vmatprep.subr.mxu0 0.0
    %368 = vmatpush1.xpose.msra.mxu0 0.0
    %369 = vmatprep.subr.mxu0 0.0
    %370 = vmatpush1.xpose.msra.mxu0 0.0
    %371 = vmatprep.subr.mxu0 0.0
    %372 = vmatpush1.xpose.msra.mxu0 0.0
    %373 = vmatprep.subr.mxu0 0.0
    %374 = vmatpush1.xpose.msra.mxu0 0.0
    %375 = vmatprep.subr.mxu0 0.0
    %376 = vmatpush1.xpose.msra.mxu0 0.0
    %377 = vmatprep.subr.mxu0 0.0
    %378 = vmatpush1.xpose.msra.mxu0 0.0
    %379 = vmatprep.subr.mxu0 0.0
    %380 = vmatpush1.xpose.msra.mxu0 0.0
    %381 = vmatprep.subr.mxu0 0.0
    %382 = vmatpush1.xpose.msra.mxu0 0.0
    %383 = vmatprep.subr.mxu0 0.0
    %384 = vmatpush1.xpose.msra.mxu0 0.0
    %385 = vmatprep.subr.mxu0 0.0
    %386 = vmatpush1.xpose.msra.mxu0 0.0
    %387 = vmatprep.subr.mxu0 0.0
    %388 = vmatpush1.xpose.msra.mxu0 0.0
    %389 = vmatprep.subr.mxu0 0.0
    %390 = vmatpush1.xpose.msra.mxu0 0.0
    %391 = vmatprep.subr.mxu0 0.0
    %392 = vmatpush1.xpose.msra.mxu0 0.0
    %393 = vmatprep.subr.mxu0 0.0
    %394 = vmatpush1.xpose.msra.mxu0 0.0
    %395 = vmatprep.subr.mxu0 0.0
    %396 = vmatpush1.xpose.msra.mxu0 0.0
    %397 = vmatprep.subr.mxu0 0.0
    %398 = vmatpush1.xpose.msra.mxu0 0.0
    %399 = vmatprep.subr.mxu0 0.0
    %400 = vmatpush1.xpose.msra.mxu0 0.0
    %401 = vmatprep.subr.mxu0 0.0
    %402 = vmatpush1.xpose.msra.mxu0 0.0
    %403 = vmatprep.subr.mxu0 0.0
    %404 = vmatpush1.xpose.msra.mxu0 0.0
    %405 = vmatprep.subr.mxu0 0.0
    %406 = vmatpush1.xpose.msra.mxu0 0.0
    %407 = vmatprep.subr.mxu0 0.0
    %408 = vmatpush1.xpose.msra.mxu0 0.0
    %409 = vmatprep.subr.mxu0 0.0
    %410 = vmatpush1.xpose.msra.mxu0 0.0
    %411 = vmatprep.mubr.f32.mxu0 0.0
    %412 = vmatmul.mubr.f32.gmra.mrb[0].mxu0 %v343
    %v413 = vpop.f32.mrb[0].mxu0
    %v414 = vadd.f32 0.0, %v413
    %v415 = vpop.f32.mrb[0].mxu0
    %416 = vdwg.mxu0
    %417 = vrot.lane.b32.xlu0 %v257, 96
    %v418 = vpop.permute.xlu0 %417
    %v419 = vsel %vm266, %v257, 0
    %v421 = vsel %vm266, %v418, 0
    %423 = vmatprep.subr.mxu0 0.0
    %424 = vmatpush1.xpose.msra.mxu0 %v421
    %425 = vmatprep.subr.mxu0 0.0
    %426 = vmatpush1.xpose.msra.mxu0 0.0
    %427 = vmatprep.subr.mxu0 0.0
    %428 = vmatpush1.xpose.msra.mxu0 0.0
    %429 = vmatprep.subr.mxu0 0.0
    %430 = vmatpush1.xpose.msra.mxu0 0.0
    %431 = vmatprep.subr.mxu0 0.0
    %432 = vmatpush1.xpose.msra.mxu0 0.0
    %433 = vmatprep.subr.mxu0 0.0
    %434 = vmatpush1.xpose.msra.mxu0 0.0
    %435 = vmatprep.subr.mxu0 0.0
    %436 = vmatpush1.xpose.msra.mxu0 0.0
    %437 = vmatprep.subr.mxu0 0.0
    %438 = vmatpush1.xpose.msra.mxu0 0.0
    %439 = vmatprep.subr.mxu0 0.0
    %440 = vmatpush1.xpose.msra.mxu0 0.0
    %441 = vmatprep.subr.mxu0 0.0
    %442 = vmatpush1.xpose.msra.mxu0 0.0
    %443 = vmatprep.subr.mxu0 0.0
    %444 = vmatpush1.xpose.msra.mxu0 0.0
    %445 = vmatprep.subr.mxu0 0.0
    %446 = vmatpush1.xpose.msra.mxu0 0.0
    %447 = vmatprep.subr.mxu0 0.0
    %448 = vmatpush1.xpose.msra.mxu0 0.0
    %449 = vmatprep.subr.mxu0 0.0
    %450 = vmatpush1.xpose.msra.mxu0 0.0
    %451 = vmatprep.subr.mxu0 0.0
    %452 = vmatpush1.xpose.msra.mxu0 0.0
    %453 = vmatprep.subr.mxu0 0.0
    %454 = vmatpush1.xpose.msra.mxu0 0.0
    %455 = vmatprep.subr.mxu0 0.0
    %456 = vmatpush1.xpose.msra.mxu0 0.0
    %457 = vmatprep.subr.mxu0 0.0
    %458 = vmatpush1.xpose.msra.mxu0 0.0
    %459 = vmatprep.subr.mxu0 0.0
    %460 = vmatpush1.xpose.msra.mxu0 0.0
    %461 = vmatprep.subr.mxu0 0.0
    %462 = vmatpush1.xpose.msra.mxu0 0.0
    %463 = vmatprep.subr.mxu0 0.0
    %464 = vmatpush1.xpose.msra.mxu0 0.0
    %465 = vmatprep.subr.mxu0 0.0
    %466 = vmatpush1.xpose.msra.mxu0 0.0
    %467 = vmatprep.subr.mxu0 0.0
    %468 = vmatpush1.xpose.msra.mxu0 0.0
    %469 = vmatprep.subr.mxu0 0.0
    %470 = vmatpush1.xpose.msra.mxu0 0.0
    %471 = vmatprep.subr.mxu0 0.0
    %472 = vmatpush1.xpose.msra.mxu0 0.0
    %473 = vmatprep.subr.mxu0 0.0
    %474 = vmatpush1.xpose.msra.mxu0 0.0
    %475 = vmatprep.subr.mxu0 0.0
    %476 = vmatpush1.xpose.msra.mxu0 0.0
    %477 = vmatprep.subr.mxu0 0.0
    %478 = vmatpush1.xpose.msra.mxu0 0.0
    %479 = vmatprep.subr.mxu0 0.0
    %480 = vmatpush1.xpose.msra.mxu0 0.0
    %481 = vmatprep.subr.mxu0 0.0
    %482 = vmatpush1.xpose.msra.mxu0 0.0
    %483 = vmatprep.subr.mxu0 0.0
    %484 = vmatpush1.xpose.msra.mxu0 0.0
    %485 = vmatprep.subr.mxu0 0.0
    %486 = vmatpush1.xpose.msra.mxu0 0.0
    %487 = vmatprep.mubr.f32.mxu0 0.0
    %488 = vmatmul.mubr.f32.gmra.mrb[0].mxu0 %v419
    %v489 = vpop.f32.mrb[0].mxu0
    %v490 = vadd.f32 0.0, %v489
    %v491 = vpop.f32.mrb[0].mxu0
    %492 = vdwg.mxu0
    %493 = vrot.lane.b32.xlu0 %v261, 96
    %v494 = vpop.permute.xlu0 %493
    %v495 = vsel %vm266, %v261, 0
    %v497 = vsel %vm266, %v494, 0
    %499 = vmatprep.subr.mxu0 0.0
    %500 = vmatpush1.xpose.msra.mxu0 %v497
    %501 = vmatprep.subr.mxu0 0.0
    %502 = vmatpush1.xpose.msra.mxu0 0.0
    %503 = vmatprep.subr.mxu0 0.0
    %504 = vmatpush1.xpose.msra.mxu0 0.0
    %505 = vmatprep.subr.mxu0 0.0
    %506 = vmatpush1.xpose.msra.mxu0 0.0
    %507 = vmatprep.subr.mxu0 0.0
    %508 = vmatpush1.xpose.msra.mxu0 0.0
    %509 = vmatprep.subr.mxu0 0.0
    %510 = vmatpush1.xpose.msra.mxu0 0.0
    %511 = vmatprep.subr.mxu0 0.0
    %512 = vmatpush1.xpose.msra.mxu0 0.0
    %513 = vmatprep.subr.mxu0 0.0
    %514 = vmatpush1.xpose.msra.mxu0 0.0
    %515 = vmatprep.subr.mxu0 0.0
    %516 = vmatpush1.xpose.msra.mxu0 0.0
    %517 = vmatprep.subr.mxu0 0.0
    %518 = vmatpush1.xpose.msra.mxu0 0.0
    %519 = vmatprep.subr.mxu0 0.0
    %520 = vmatpush1.xpose.msra.mxu0 0.0
    %521 = vmatprep.subr.mxu0 0.0
    %522 = vmatpush1.xpose.msra.mxu0 0.0
    %523 = vmatprep.subr.mxu0 0.0
    %524 = vmatpush1.xpose.msra.mxu0 0.0
    %525 = vmatprep.subr.mxu0 0.0
    %526 = vmatpush1.xpose.msra.mxu0 0.0
    %527 = vmatprep.subr.mxu0 0.0
    %528 = vmatpush1.xpose.msra.mxu0 0.0
    %529 = vmatprep.subr.mxu0 0.0
    %530 = vmatpush1.xpose.msra.mxu0 0.0
    %531 = vmatprep.subr.mxu0 0.0
    %532 = vmatpush1.xpose.msra.mxu0 0.0
    %533 = vmatprep.subr.mxu0 0.0
    %534 = vmatpush1.xpose.msra.mxu0 0.0
    %535 = vmatprep.subr.mxu0 0.0
    %536 = vmatpush1.xpose.msra.mxu0 0.0
    %537 = vmatprep.subr.mxu0 0.0
    %538 = vmatpush1.xpose.msra.mxu0 0.0
    %539 = vmatprep.subr.mxu0 0.0
    %540 = vmatpush1.xpose.msra.mxu0 0.0
    %541 = vmatprep.subr.mxu0 0.0
    %542 = vmatpush1.xpose.msra.mxu0 0.0
    %543 = vmatprep.subr.mxu0 0.0
    %544 = vmatpush1.xpose.msra.mxu0 0.0
    %545 = vmatprep.subr.mxu0 0.0
    %546 = vmatpush1.xpose.msra.mxu0 0.0
    %547 = vmatprep.subr.mxu0 0.0
    %548 = vmatpush1.xpose.msra.mxu0 0.0
    %549 = vmatprep.subr.mxu0 0.0
    %550 = vmatpush1.xpose.msra.mxu0 0.0
    %551 = vmatprep.subr.mxu0 0.0
    %552 = vmatpush1.xpose.msra.mxu0 0.0
    %553 = vmatprep.subr.mxu0 0.0
    %554 = vmatpush1.xpose.msra.mxu0 0.0
    %555 = vmatprep.subr.mxu0 0.0
    %556 = vmatpush1.xpose.msra.mxu0 0.0
    %557 = vmatprep.subr.mxu0 0.0
    %558 = vmatpush1.xpose.msra.mxu0 0.0
    %559 = vmatprep.subr.mxu0 0.0
    %560 = vmatpush1.xpose.msra.mxu0 0.0
    %561 = vmatprep.subr.mxu0 0.0
    %562 = vmatpush1.xpose.msra.mxu0 0.0
    %563 = vmatprep.mubr.f32.mxu0 0.0
    %564 = vmatmul.mubr.f32.gmra.mrb[0].mxu0 %v495
    %v565 = vpop.f32.mrb[0].mxu0
    %v566 = vadd.f32 0.0, %v565
    %v567 = vpop.f32.mrb[0].mxu0
    %568 = vdwg.mxu0
    %569 = vrot.lane.b32.xlu0 %v247, 96
    %v570 = vpop.permute.xlu0 %569
    %v571 = vsel %vm266, %v247, 0
    %v573 = vsel %vm266, %v570, 0
    %575 = vmatprep.subr.mxu0 0.0
    %576 = vmatpush1.xpose.msra.mxu0 %v573
    %577 = vmatprep.subr.mxu0 0.0
    %578 = vmatpush1.xpose.msra.mxu0 0.0
    %579 = vmatprep.subr.mxu0 0.0
    %580 = vmatpush1.xpose.msra.mxu0 0.0
    %581 = vmatprep.subr.mxu0 0.0
    %582 = vmatpush1.xpose.msra.mxu0 0.0
    %583 = vmatprep.subr.mxu0 0.0
    %584 = vmatpush1.xpose.msra.mxu0 0.0
    %585 = vmatprep.subr.mxu0 0.0
    %586 = vmatpush1.xpose.msra.mxu0 0.0
    %587 = vmatprep.subr.mxu0 0.0
    %588 = vmatpush1.xpose.msra.mxu0 0.0
    %589 = vmatprep.subr.mxu0 0.0
    %590 = vmatpush1.xpose.msra.mxu0 0.0
    %591 = vmatprep.subr.mxu0 0.0
    %592 = vmatpush1.xpose.msra.mxu0 0.0
    %593 = vmatprep.subr.mxu0 0.0
    %594 = vmatpush1.xpose.msra.mxu0 0.0
    %595 = vmatprep.subr.mxu0 0.0
    %596 = vmatpush1.xpose.msra.mxu0 0.0
    %597 = vmatprep.subr.mxu0 0.0
    %598 = vmatpush1.xpose.msra.mxu0 0.0
    %599 = vmatprep.subr.mxu0 0.0
    %600 = vmatpush1.xpose.msra.mxu0 0.0
    %601 = vmatprep.subr.mxu0 0.0
    %602 = vmatpush1.xpose.msra.mxu0 0.0
    %603 = vmatprep.subr.mxu0 0.0
    %604 = vmatpush1.xpose.msra.mxu0 0.0
    %605 = vmatprep.subr.mxu0 0.0
    %606 = vmatpush1.xpose.msra.mxu0 0.0
    %607 = vmatprep.subr.mxu0 0.0
    %608 = vmatpush1.xpose.msra.mxu0 0.0
    %609 = vmatprep.subr.mxu0 0.0
    %610 = vmatpush1.xpose.msra.mxu0 0.0
    %611 = vmatprep.subr.mxu0 0.0
    %612 = vmatpush1.xpose.msra.mxu0 0.0
    %613 = vmatprep.subr.mxu0 0.0
    %614 = vmatpush1.xpose.msra.mxu0 0.0
    %615 = vmatprep.subr.mxu0 0.0
    %616 = vmatpush1.xpose.msra.mxu0 0.0
    %617 = vmatprep.subr.mxu0 0.0
    %618 = vmatpush1.xpose.msra.mxu0 0.0
    %619 = vmatprep.subr.mxu0 0.0
    %620 = vmatpush1.xpose.msra.mxu0 0.0
    %621 = vmatprep.subr.mxu0 0.0
    %622 = vmatpush1.xpose.msra.mxu0 0.0
    %623 = vmatprep.subr.mxu0 0.0
    %624 = vmatpush1.xpose.msra.mxu0 0.0
    %625 = vmatprep.subr.mxu0 0.0
    %626 = vmatpush1.xpose.msra.mxu0 0.0
    %627 = vmatprep.subr.mxu0 0.0
    %628 = vmatpush1.xpose.msra.mxu0 0.0
    %629 = vmatprep.subr.mxu0 0.0
    %630 = vmatpush1.xpose.msra.mxu0 0.0
    %631 = vmatprep.subr.mxu0 0.0
    %632 = vmatpush1.xpose.msra.mxu0 0.0
    %633 = vmatprep.subr.mxu0 0.0
    %634 = vmatpush1.xpose.msra.mxu0 0.0
    %635 = vmatprep.subr.mxu0 0.0
    %636 = vmatpush1.xpose.msra.mxu0 0.0
    %637 = vmatprep.subr.mxu0 0.0
    %638 = vmatpush1.xpose.msra.mxu0 0.0
    %639 = vmatprep.mubr.f32.mxu0 0.0
    %640 = vmatmul.mubr.f32.gmra.mrb[0].mxu0 %v571
    %v641 = vpop.f32.mrb[0].mxu0
    %v642 = vadd.f32 0.0, %v641
    %v643 = vpop.f32.mrb[0].mxu0
    %644 = vdwg.mxu0
    %645 = vrot.lane.b32.xlu0 %v255, 96
    %v646 = vpop.permute.xlu0 %645
    %v647 = vsel %vm266, %v255, 0
    %v649 = vsel %vm266, %v646, 0
    %651 = vmatprep.subr.mxu0 0.0
    %652 = vmatpush1.xpose.msra.mxu0 %v649
    %653 = vmatprep.subr.mxu0 0.0
    %654 = vmatpush1.xpose.msra.mxu0 0.0
    %655 = vmatprep.subr.mxu0 0.0
    %656 = vmatpush1.xpose.msra.mxu0 0.0
    %657 = vmatprep.subr.mxu0 0.0
    %658 = vmatpush1.xpose.msra.mxu0 0.0
    %659 = vmatprep.subr.mxu0 0.0
    %660 = vmatpush1.xpose.msra.mxu0 0.0
    %661 = vmatprep.subr.mxu0 0.0
    %662 = vmatpush1.xpose.msra.mxu0 0.0
    %663 = vmatprep.subr.mxu0 0.0
    %664 = vmatpush1.xpose.msra.mxu0 0.0
    %665 = vmatprep.subr.mxu0 0.0
    %666 = vmatpush1.xpose.msra.mxu0 0.0
    %667 = vmatprep.subr.mxu0 0.0
    %668 = vmatpush1.xpose.msra.mxu0 0.0
    %669 = vmatprep.subr.mxu0 0.0
    %670 = vmatpush1.xpose.msra.mxu0 0.0
    %671 = vmatprep.subr.mxu0 0.0
    %672 = vmatpush1.xpose.msra.mxu0 0.0
    %673 = vmatprep.subr.mxu0 0.0
    %674 = vmatpush1.xpose.msra.mxu0 0.0
    %675 = vmatprep.subr.mxu0 0.0
    %676 = vmatpush1.xpose.msra.mxu0 0.0
    %677 = vmatprep.subr.mxu0 0.0
    %678 = vmatpush1.xpose.msra.mxu0 0.0
    %679 = vmatprep.subr.mxu0 0.0
    %680 = vmatpush1.xpose.msra.mxu0 0.0
    %681 = vmatprep.subr.mxu0 0.0
    %682 = vmatpush1.xpose.msra.mxu0 0.0
    %683 = vmatprep.subr.mxu0 0.0
    %684 = vmatpush1.xpose.msra.mxu0 0.0
    %685 = vmatprep.subr.mxu0 0.0
    %686 = vmatpush1.xpose.msra.mxu0 0.0
    %687 = vmatprep.subr.mxu0 0.0
    %688 = vmatpush1.xpose.msra.mxu0 0.0
    %689 = vmatprep.subr.mxu0 0.0
    %690 = vmatpush1.xpose.msra.mxu0 0.0
    %691 = vmatprep.subr.mxu0 0.0
    %692 = vmatpush1.xpose.msra.mxu0 0.0
    %693 = vmatprep.subr.mxu0 0.0
    %694 = vmatpush1.xpose.msra.mxu0 0.0
    %695 = vmatprep.subr.mxu0 0.0
    %696 = vmatpush1.xpose.msra.mxu0 0.0
    %697 = vmatprep.subr.mxu0 0.0
    %698 = vmatpush1.xpose.msra.mxu0 0.0
    %699 = vmatprep.subr.mxu0 0.0
    %700 = vmatpush1.xpose.msra.mxu0 0.0
    %701 = vmatprep.subr.mxu0 0.0
    %702 = vmatpush1.xpose.msra.mxu0 0.0
    %703 = vmatprep.subr.mxu0 0.0
    %704 = vmatpush1.xpose.msra.mxu0 0.0
    %705 = vmatprep.subr.mxu0 0.0
    %706 = vmatpush1.xpose.msra.mxu0 0.0
    %707 = vmatprep.subr.mxu0 0.0
    %708 = vmatpush1.xpose.msra.mxu0 0.0
    %709 = vmatprep.subr.mxu0 0.0
    %710 = vmatpush1.xpose.msra.mxu0 0.0
    %711 = vmatprep.subr.mxu0 0.0
    %712 = vmatpush1.xpose.msra.mxu0 0.0
    %713 = vmatprep.subr.mxu0 0.0
    %714 = vmatpush1.xpose.msra.mxu0 0.0
    %715 = vmatprep.mubr.f32.mxu0 0.0
    %716 = vmatmul.mubr.f32.gmra.mrb[0].mxu0 %v647
    %v717 = vpop.f32.mrb[0].mxu0
    %v718 = vadd.f32 0.0, %v717
    %v719 = vpop.f32.mrb[0].mxu0
    %720 = vdwg.mxu0
    %721 = vrot.lane.b32.xlu0 %v259, 96
    %v722 = vpop.permute.xlu0 %721
    %v723 = vsel %vm266, %v259, 0
    %v725 = vsel %vm266, %v722, 0
    %727 = vmatprep.subr.mxu0 0.0
    %728 = vmatpush1.xpose.msra.mxu0 %v725
    %729 = vmatprep.subr.mxu0 0.0
    %730 = vmatpush1.xpose.msra.mxu0 0.0
    %731 = vmatprep.subr.mxu0 0.0
    %732 = vmatpush1.xpose.msra.mxu0 0.0
    %733 = vmatprep.subr.mxu0 0.0
    %734 = vmatpush1.xpose.msra.mxu0 0.0
    %735 = vmatprep.subr.mxu0 0.0
    %736 = vmatpush1.xpose.msra.mxu0 0.0
    %737 = vmatprep.subr.mxu0 0.0
    %738 = vmatpush1.xpose.msra.mxu0 0.0
    %739 = vmatprep.subr.mxu0 0.0
    %740 = vmatpush1.xpose.msra.mxu0 0.0
    %741 = vmatprep.subr.mxu0 0.0
    %742 = vmatpush1.xpose.msra.mxu0 0.0
    %743 = vmatprep.subr.mxu0 0.0
    %744 = vmatpush1.xpose.msra.mxu0 0.0
    %745 = vmatprep.subr.mxu0 0.0
    %746 = vmatpush1.xpose.msra.mxu0 0.0
    %747 = vmatprep.subr.mxu0 0.0
    %748 = vmatpush1.xpose.msra.mxu0 0.0
    %749 = vmatprep.subr.mxu0 0.0
    %750 = vmatpush1.xpose.msra.mxu0 0.0
    %751 = vmatprep.subr.mxu0 0.0
    %752 = vmatpush1.xpose.msra.mxu0 0.0
    %753 = vmatprep.subr.mxu0 0.0
    %754 = vmatpush1.xpose.msra.mxu0 0.0
    %755 = vmatprep.subr.mxu0 0.0
    %756 = vmatpush1.xpose.msra.mxu0 0.0
    %757 = vmatprep.subr.mxu0 0.0
    %758 = vmatpush1.xpose.msra.mxu0 0.0
    %759 = vmatprep.subr.mxu0 0.0
    %760 = vmatpush1.xpose.msra.mxu0 0.0
    %761 = vmatprep.subr.mxu0 0.0
    %762 = vmatpush1.xpose.msra.mxu0 0.0
    %763 = vmatprep.subr.mxu0 0.0
    %764 = vmatpush1.xpose.msra.mxu0 0.0
    %765 = vmatprep.subr.mxu0 0.0
    %766 = vmatpush1.xpose.msra.mxu0 0.0
    %767 = vmatprep.subr.mxu0 0.0
    %768 = vmatpush1.xpose.msra.mxu0 0.0
    %769 = vmatprep.subr.mxu0 0.0
    %770 = vmatpush1.xpose.msra.mxu0 0.0
    %771 = vmatprep.subr.mxu0 0.0
    %772 = vmatpush1.xpose.msra.mxu0 0.0
    %773 = vmatprep.subr.mxu0 0.0
    %774 = vmatpush1.xpose.msra.mxu0 0.0
    %775 = vmatprep.subr.mxu0 0.0
    %776 = vmatpush1.xpose.msra.mxu0 0.0
    %777 = vmatprep.subr.mxu0 0.0
    %778 = vmatpush1.xpose.msra.mxu0 0.0
    %779 = vmatprep.subr.mxu0 0.0
    %780 = vmatpush1.xpose.msra.mxu0 0.0
    %781 = vmatprep.subr.mxu0 0.0
    %782 = vmatpush1.xpose.msra.mxu0 0.0
    %783 = vmatprep.subr.mxu0 0.0
    %784 = vmatpush1.xpose.msra.mxu0 0.0
    %785 = vmatprep.subr.mxu0 0.0
    %786 = vmatpush1.xpose.msra.mxu0 0.0
    %787 = vmatprep.subr.mxu0 0.0
    %788 = vmatpush1.xpose.msra.mxu0 0.0
    %789 = vmatprep.subr.mxu0 0.0
    %790 = vmatpush1.xpose.msra.mxu0 0.0
    %791 = vmatprep.mubr.f32.mxu0 0.0
    %792 = vmatmul.mubr.f32.gmra.mrb[0].mxu0 %v723
    %v793 = vpop.f32.mrb[0].mxu0
    %v794 = vadd.f32 0.0, %v793
    %v795 = vpop.f32.mrb[0].mxu0
    %796 = vdwg.mxu0
    %797 = vrot.lane.b32.xlu0 %v263, 96
    %v798 = vpop.permute.xlu0 %797
    %v799 = vsel %vm266, %v263, 0
    %v801 = vsel %vm266, %v798, 0
    %803 = vmatprep.subr.mxu0 0.0
    %804 = vmatpush1.xpose.msra.mxu0 %v801
    %805 = vmatprep.subr.mxu0 0.0
    %806 = vmatpush1.xpose.msra.mxu0 0.0
    %807 = vmatprep.subr.mxu0 0.0
    %808 = vmatpush1.xpose.msra.mxu0 0.0
    %809 = vmatprep.subr.mxu0 0.0
    %810 = vmatpush1.xpose.msra.mxu0 0.0
    %811 = vmatprep.subr.mxu0 0.0
    %812 = vmatpush1.xpose.msra.mxu0 0.0
    %813 = vmatprep.subr.mxu0 0.0
    %814 = vmatpush1.xpose.msra.mxu0 0.0
    %815 = vmatprep.subr.mxu0 0.0
    %816 = vmatpush1.xpose.msra.mxu0 0.0
    %817 = vmatprep.subr.mxu0 0.0
    %818 = vmatpush1.xpose.msra.mxu0 0.0
    %819 = vmatprep.subr.mxu0 0.0
    %820 = vmatpush1.xpose.msra.mxu0 0.0
    %821 = vmatprep.subr.mxu0 0.0
    %822 = vmatpush1.xpose.msra.mxu0 0.0
    %823 = vmatprep.subr.mxu0 0.0
    %824 = vmatpush1.xpose.msra.mxu0 0.0
    %825 = vmatprep.subr.mxu0 0.0
    %826 = vmatpush1.xpose.msra.mxu0 0.0
    %827 = vmatprep.subr.mxu0 0.0
    %828 = vmatpush1.xpose.msra.mxu0 0.0
    %829 = vmatprep.subr.mxu0 0.0
    %830 = vmatpush1.xpose.msra.mxu0 0.0
    %831 = vmatprep.subr.mxu0 0.0
    %832 = vmatpush1.xpose.msra.mxu0 0.0
    %833 = vmatprep.subr.mxu0 0.0
    %834 = vmatpush1.xpose.msra.mxu0 0.0
    %835 = vmatprep.subr.mxu0 0.0
    %836 = vmatpush1.xpose.msra.mxu0 0.0
    %837 = vmatprep.subr.mxu0 0.0
    %838 = vmatpush1.xpose.msra.mxu0 0.0
    %839 = vmatprep.subr.mxu0 0.0
    %840 = vmatpush1.xpose.msra.mxu0 0.0
    %841 = vmatprep.subr.mxu0 0.0
    %842 = vmatpush1.xpose.msra.mxu0 0.0
    %843 = vmatprep.subr.mxu0 0.0
    %844 = vmatpush1.xpose.msra.mxu0 0.0
    %845 = vmatprep.subr.mxu0 0.0
    %846 = vmatpush1.xpose.msra.mxu0 0.0
    %847 = vmatprep.subr.mxu0 0.0
    %848 = vmatpush1.xpose.msra.mxu0 0.0
    %849 = vmatprep.subr.mxu0 0.0
    %850 = vmatpush1.xpose.msra.mxu0 0.0
    %851 = vmatprep.subr.mxu0 0.0
    %852 = vmatpush1.xpose.msra.mxu0 0.0
    %853 = vmatprep.subr.mxu0 0.0
    %854 = vmatpush1.xpose.msra.mxu0 0.0
    %855 = vmatprep.subr.mxu0 0.0
    %856 = vmatpush1.xpose.msra.mxu0 0.0
    %857 = vmatprep.subr.mxu0 0.0
    %858 = vmatpush1.xpose.msra.mxu0 0.0
    %859 = vmatprep.subr.mxu0 0.0
    %860 = vmatpush1.xpose.msra.mxu0 0.0
    %861 = vmatprep.subr.mxu0 0.0
    %862 = vmatpush1.xpose.msra.mxu0 0.0
    %863 = vmatprep.subr.mxu0 0.0
    %864 = vmatpush1.xpose.msra.mxu0 0.0
    %865 = vmatprep.subr.mxu0 0.0
    %866 = vmatpush1.xpose.msra.mxu0 0.0
    %867 = vmatprep.mubr.f32.mxu0 0.0
    %868 = vmatmul.mubr.f32.gmra.mrb[0].mxu0 %v799
    %v869 = vpop.f32.mrb[0].mxu0
    %v870 = vadd.f32 0.0, %v869
    %v871 = vpop.f32.mrb[0].mxu0
    %872 = vdwg.mxu0
    %v873 = vld [vmem:[#allocation8] sm:$0xff]
    %v874 = vld [vmem:[#allocation8 + $0x8] sm:$0xff]
    %vm875 = vcmp.gt.f32.partialorder %v873, 0.5
    %vm876 = vcmp.gt.f32.partialorder %v874, 0.5
    %v877 = vsel %vm875, -1e+09, %v338
    %v878 = vsel %vm875, -1e+09, %v414
    %v879 = vsel %vm875, -1e+09, %v490
    %v880 = vsel %vm875, -1e+09, %v566
    %v881 = vsel %vm876, -1e+09, %v642
    %v882 = vsel %vm876, -1e+09, %v718
    %v883 = vsel %vm876, -1e+09, %v794
    %v884 = vsel %vm876, -1e+09, %v870
    %v885 = vsel %vm266, %v877, -inf
    %886 = vmax.xlane.f32.xlu0 %v885
    %v887 = vpop.xlane.xlu0 %886
    %v888 = vsel %vm266, %v878, -inf
    %889 = vmax.xlane.f32.xlu0 %v888
    %v890 = vpop.xlane.xlu0 %889
    %v891 = vsel %vm266, %v879, -inf
    %892 = vmax.xlane.f32.xlu0 %v891
    %v893 = vpop.xlane.xlu0 %892
    %v894 = vsel %vm266, %v880, -inf
    %895 = vmax.xlane.f32.xlu0 %v894
    %v896 = vpop.xlane.xlu0 %895
    %v897 = vsel %vm266, %v881, -inf
    %898 = vmax.xlane.f32.xlu0 %v897
    %v899 = vpop.xlane.xlu0 %898
    %v900 = vsel %vm266, %v882, -inf
    %901 = vmax.xlane.f32.xlu0 %v900
    %v902 = vpop.xlane.xlu0 %901
    %v903 = vsel %vm266, %v883, -inf
    %904 = vmax.xlane.f32.xlu0 %v903
    %v905 = vpop.xlane.xlu0 %904
    %v906 = vsel %vm266, %v884, -inf
    %907 = vmax.xlane.f32.xlu0 %v906
    %v908 = vpop.xlane.xlu0 %907
    %v909 = vsub.f32 %v877, %v887
    %v910 = vsub.f32 %v878, %v890
    %v911 = vsub.f32 %v879, %v893
    %v912 = vsub.f32 %v880, %v896
    %v913 = vsub.f32 %v881, %v899
    %v914 = vsub.f32 %v882, %v902
    %v915 = vsub.f32 %v883, %v905
    %v916 = vsub.f32 %v884, %v908
    %v917 = vmul.f32 %v909, 1.442695
    %v918 = vpow.pop %v917
    %v919 = vmul.f32 %v910, 1.442695
    %v920 = vpow.pop %v919
    %v921 = vmul.f32 %v911, 1.442695
    %v922 = vpow.pop %v921
    %v923 = vmul.f32 %v912, 1.442695
    %v924 = vpow.pop %v923
    %v925 = vmul.f32 %v913, 1.442695
    %v926 = vpow.pop %v925
    %v927 = vmul.f32 %v914, 1.442695
    %v928 = vpow.pop %v927
    %v929 = vmul.f32 %v915, 1.442695
    %v930 = vpow.pop %v929
    %v931 = vmul.f32 %v916, 1.442695
    %v932 = vpow.pop %v931
    %v933 = vsel %vm266, %v918, 0.0
    %934 = vadd.xlane.f32.xlu0 %v933
    %v935 = vpop.xlane.xlu0 %934
    %v936 = vsel %vm266, %v920, 0.0
    %937 = vadd.xlane.f32.xlu0 %v936
    %v938 = vpop.xlane.xlu0 %937
    %v939 = vsel %vm266, %v922, 0.0
    %940 = vadd.xlane.f32.xlu0 %v939
    %v941 = vpop.xlane.xlu0 %940
    %v942 = vsel %vm266, %v924, 0.0
    %943 = vadd.xlane.f32.xlu0 %v942
    %v944 = vpop.xlane.xlu0 %943
    %v945 = vsel %vm266, %v926, 0.0
    %946 = vadd.xlane.f32.xlu0 %v945
    %v947 = vpop.xlane.xlu0 %946
    %v948 = vsel %vm266, %v928, 0.0
    %949 = vadd.xlane.f32.xlu0 %v948
    %v950 = vpop.xlane.xlu0 %949
    %v951 = vsel %vm266, %v930, 0.0
    %952 = vadd.xlane.f32.xlu0 %v951
    %v953 = vpop.xlane.xlu0 %952
    %v954 = vsel %vm266, %v932, 0.0
    %955 = vadd.xlane.f32.xlu0 %v954
    %v956 = vpop.xlane.xlu0 %955
    %v957 = vrcp.pop %v935
    %v958 = vmul.f32 %v918, %v957
    %v959 = vrcp.pop %v938
    %v960 = vmul.f32 %v920, %v959
    %v961 = vrcp.pop %v941
    %v962 = vmul.f32 %v922, %v961
    %v963 = vrcp.pop %v944
    %v964 = vmul.f32 %v924, %v963
    %v965 = vrcp.pop %v947
    %v966 = vmul.f32 %v926, %v965
    %v967 = vrcp.pop %v950
    %v968 = vmul.f32 %v928, %v967
    %v969 = vrcp.pop %v953
    %v970 = vmul.f32 %v930, %v969
    %v971 = vrcp.pop %v956
    %v972 = vmul.f32 %v932, %v971
    %973 = vst.msk [vmem:[#allocation14] sm:$0xff] %vm266, %v958
    %974 = vst.msk [vmem:[#allocation14 + $0x8] sm:$0xff] %vm266, %v960
    %975 = vst.msk [vmem:[#allocation14 + $0x10] sm:$0xff] %vm266, %v962
    %976 = vst.msk [vmem:[#allocation14 + $0x18] sm:$0xff] %vm266, %v964
    %977 = vst.msk [vmem:[#allocation14 + $0x20] sm:$0xff] %vm266, %v966
    %978 = vst.msk [vmem:[#allocation14 + $0x28] sm:$0xff] %vm266, %v968
    %979 = vst.msk [vmem:[#allocation14 + $0x30] sm:$0xff] %vm266, %v970
    %980 = vst.msk [vmem:[#allocation14 + $0x38] sm:$0xff] %vm266, %v972
    %981 = vrot.lane.b32.xlu0 %v242, 64
    %v982 = vpop.permute.xlu0 %981
    %v985 = vsel %vm266, %v958, 0
    %987 = vmatprep.subr.mxu0 0.0
    %988 = vmatpush1.msra.mxu0 %v982
    %989 = vmatprep.subr.mxu0 0.0
    %990 = vmatpush1.msra.mxu0 0.0
    %991 = vmatprep.subr.mxu0 0.0
    %992 = vmatpush1.msra.mxu0 0.0
    %993 = vmatprep.subr.mxu0 0.0
    %994 = vmatpush1.msra.mxu0 0.0
    %995 = vmatprep.subr.mxu0 0.0
    %996 = vmatpush1.msra.mxu0 0.0
    %997 = vmatprep.subr.mxu0 0.0
    %998 = vmatpush1.msra.mxu0 0.0
    %999 = vmatprep.subr.mxu0 0.0
    %1000 = vmatpush1.msra.mxu0 0.0
    %1001 = vmatprep.subr.mxu0 0.0
    %1002 = vmatpush1.msra.mxu0 0.0
    %1003 = vmatprep.subr.mxu0 0.0
    %1004 = vmatpush1.msra.mxu0 0.0
    %1005 = vmatprep.subr.mxu0 0.0
    %1006 = vmatpush1.msra.mxu0 0.0
    %1007 = vmatprep.subr.mxu0 0.0
    %1008 = vmatpush1.msra.mxu0 0.0
    %1009 = vmatprep.subr.mxu0 0.0
    %1010 = vmatpush1.msra.mxu0 0.0
    %1011 = vmatprep.subr.mxu0 0.0
    %1012 = vmatpush1.msra.mxu0 0.0
    %1013 = vmatprep.subr.mxu0 0.0
    %1014 = vmatpush1.msra.mxu0 0.0
    %1015 = vmatprep.subr.mxu0 0.0
    %1016 = vmatpush1.msra.mxu0 0.0
    %1017 = vmatprep.subr.mxu0 0.0
    %1018 = vmatpush1.msra.mxu0 0.0
    %1019 = vmatprep.subr.mxu0 0.0
    %1020 = vmatpush1.msra.mxu0 0.0
    %1021 = vmatprep.subr.mxu0 0.0
    %1022 = vmatpush1.msra.mxu0 0.0
    %1023 = vmatprep.subr.mxu0 0.0
    %1024 = vmatpush1.msra.mxu0 0.0
    %1025 = vmatprep.subr.mxu0 0.0
    %1026 = vmatpush1.msra.mxu0 0.0
    %1027 = vmatprep.subr.mxu0 0.0
    %1028 = vmatpush1.msra.mxu0 0.0
    %1029 = vmatprep.subr.mxu0 0.0
    %1030 = vmatpush1.msra.mxu0 0.0
    %1031 = vmatprep.subr.mxu0 0.0
    %1032 = vmatpush1.msra.mxu0 0.0
    %1033 = vmatprep.subr.mxu0 0.0
    %1034 = vmatpush1.msra.mxu0 0.0
    %1035 = vmatprep.subr.mxu0 0.0
    %1036 = vmatpush1.msra.mxu0 0.0
    %1037 = vmatprep.subr.mxu0 0.0
    %1038 = vmatpush1.msra.mxu0 0.0
    %1039 = vmatprep.subr.mxu0 0.0
    %1040 = vmatpush1.msra.mxu0 0.0
    %1041 = vmatprep.subr.mxu0 0.0
    %1042 = vmatpush1.msra.mxu0 0.0
    %1043 = vmatprep.subr.mxu0 0.0
    %1044 = vmatpush1.msra.mxu0 0.0
    %1045 = vmatprep.subr.mxu0 0.0
    %1046 = vmatpush1.msra.mxu0 0.0
    %1047 = vmatprep.subr.mxu0 0.0
    %1048 = vmatpush1.msra.mxu0 0.0
    %1049 = vmatprep.subr.mxu0 0.0
    %1050 = vmatpush1.msra.mxu0 0.0
    %1051 = vmatprep.mubr.f32.mxu0 0.0
    %1052 = vmatmul.mubr.f32.gmra.mrb[0].mxu0 %v985
    %v1053 = vpop.f32.mrb[0].mxu0
    %v1054 = vadd.f32 0.0, %v1053
    %v1055 = vpop.f32.mrb[0].mxu0
    %1056 = vdwg.mxu0
    %1057 = vrot.lane.b32.xlu0 %v253, 64
    %v1058 = vpop.permute.xlu0 %1057
    %v1061 = vsel %vm266, %v960, 0
    %1063 = vmatprep.subr.mxu0 0.0
    %1064 = vmatpush1.msra.mxu0 %v1058
    %1065 = vmatprep.subr.mxu0 0.0
    %1066 = vmatpush1.msra.mxu0 0.0
    %1067 = vmatprep.subr.mxu0 0.0
    %1068 = vmatpush1.msra.mxu0 0.0
    %1069 = vmatprep.subr.mxu0 0.0
    %1070 = vmatpush1.msra.mxu0 0.0
    %1071 = vmatprep.subr.mxu0 0.0
    %1072 = vmatpush1.msra.mxu0 0.0
    %1073 = vmatprep.subr.mxu0 0.0
    %1074 = vmatpush1.msra.mxu0 0.0
    %1075 = vmatprep.subr.mxu0 0.0
    %1076 = vmatpush1.msra.mxu0 0.0
    %1077 = vmatprep.subr.mxu0 0.0
    %1078 = vmatpush1.msra.mxu0 0.0
    %1079 = vmatprep.subr.mxu0 0.0
    %1080 = vmatpush1.msra.mxu0 0.0
    %1081 = vmatprep.subr.mxu0 0.0
    %1082 = vmatpush1.msra.mxu0 0.0
    %1083 = vmatprep.subr.mxu0 0.0
    %1084 = vmatpush1.msra.mxu0 0.0
    %1085 = vmatprep.subr.mxu0 0.0
    %1086 = vmatpush1.msra.mxu0 0.0
    %1087 = vmatprep.subr.mxu0 0.0
    %1088 = vmatpush1.msra.mxu0 0.0
    %1089 = vmatprep.subr.mxu0 0.0
    %1090 = vmatpush1.msra.mxu0 0.0
    %1091 = vmatprep.subr.mxu0 0.0
    %1092 = vmatpush1.msra.mxu0 0.0
    %1093 = vmatprep.subr.mxu0 0.0
    %1094 = vmatpush1.msra.mxu0 0.0
    %1095 = vmatprep.subr.mxu0 0.0
    %1096 = vmatpush1.msra.mxu0 0.0
    %1097 = vmatprep.subr.mxu0 0.0
    %1098 = vmatpush1.msra.mxu0 0.0
    %1099 = vmatprep.subr.mxu0 0.0
    %1100 = vmatpush1.msra.mxu0 0.0
    %1101 = vmatprep.subr.mxu0 0.0
    %1102 = vmatpush1.msra.mxu0 0.0
    %1103 = vmatprep.subr.mxu0 0.0
    %1104 = vmatpush1.msra.mxu0 0.0
    %1105 = vmatprep.subr.mxu0 0.0
    %1106 = vmatpush1.msra.mxu0 0.0
    %1107 = vmatprep.subr.mxu0 0.0
    %1108 = vmatpush1.msra.mxu0 0.0
    %1109 = vmatprep.subr.mxu0 0.0
    %1110 = vmatpush1.msra.mxu0 0.0
    %1111 = vmatprep.subr.mxu0 0.0
    %1112 = vmatpush1.msra.mxu0 0.0
    %1113 = vmatprep.subr.mxu0 0.0
    %1114 = vmatpush1.msra.mxu0 0.0
    %1115 = vmatprep.subr.mxu0 0.0
    %1116 = vmatpush1.msra.mxu0 0.0
    %1117 = vmatprep.subr.mxu0 0.0
    %1118 = vmatpush1.msra.mxu0 0.0
    %1119 = vmatprep.subr.mxu0 0.0
    %1120 = vmatpush1.msra.mxu0 0.0
    %1121 = vmatprep.subr.mxu0 0.0
    %1122 = vmatpush1.msra.mxu0 0.0
    %1123 = vmatprep.subr.mxu0 0.0
    %1124 = vmatpush1.msra.mxu0 0.0
    %1125 = vmatprep.subr.mxu0 0.0
    %1126 = vmatpush1.msra.mxu0 0.0
    %1127 = vmatprep.mubr.f32.mxu0 0.0
    %1128 = vmatmul.mubr.f32.gmra.mrb[0].mxu0 %v1061
    %v1129 = vpop.f32.mrb[0].mxu0
    %v1130 = vadd.f32 0.0, %v1129
    %v1131 = vpop.f32.mrb[0].mxu0
    %1132 = vdwg.mxu0
    %1133 = vrot.lane.b32.xlu0 %v257, 64
    %v1134 = vpop.permute.xlu0 %1133
    %v1137 = vsel %vm266, %v962, 0
    %1139 = vmatprep.subr.mxu0 0.0
    %1140 = vmatpush1.msra.mxu0 %v1134
    %1141 = vmatprep.subr.mxu0 0.0
    %1142 = vmatpush1.msra.mxu0 0.0
    %1143 = vmatprep.subr.mxu0 0.0
    %1144 = vmatpush1.msra.mxu0 0.0
    %1145 = vmatprep.subr.mxu0 0.0
    %1146 = vmatpush1.msra.mxu0 0.0
    %1147 = vmatprep.subr.mxu0 0.0
    %1148 = vmatpush1.msra.mxu0 0.0
    %1149 = vmatprep.subr.mxu0 0.0
    %1150 = vmatpush1.msra.mxu0 0.0
    %1151 = vmatprep.subr.mxu0 0.0
    %1152 = vmatpush1.msra.mxu0 0.0
    %1153 = vmatprep.subr.mxu0 0.0
    %1154 = vmatpush1.msra.mxu0 0.0
    %1155 = vmatprep.subr.mxu0 0.0
    %1156 = vmatpush1.msra.mxu0 0.0
    %1157 = vmatprep.subr.mxu0 0.0
    %1158 = vmatpush1.msra.mxu0 0.0
    %1159 = vmatprep.subr.mxu0 0.0
    %1160 = vmatpush1.msra.mxu0 0.0
    %1161 = vmatprep.subr.mxu0 0.0
    %1162 = vmatpush1.msra.mxu0 0.0
    %1163 = vmatprep.subr.mxu0 0.0
    %1164 = vmatpush1.msra.mxu0 0.0
    %1165 = vmatprep.subr.mxu0 0.0
    %1166 = vmatpush1.msra.mxu0 0.0
    %1167 = vmatprep.subr.mxu0 0.0
    %1168 = vmatpush1.msra.mxu0 0.0
    %1169 = vmatprep.subr.mxu0 0.0
    %1170 = vmatpush1.msra.mxu0 0.0
    %1171 = vmatprep.subr.mxu0 0.0
    %1172 = vmatpush1.msra.mxu0 0.0
    %1173 = vmatprep.subr.mxu0 0.0
    %1174 = vmatpush1.msra.mxu0 0.0
    %1175 = vmatprep.subr.mxu0 0.0
    %1176 = vmatpush1.msra.mxu0 0.0
    %1177 = vmatprep.subr.mxu0 0.0
    %1178 = vmatpush1.msra.mxu0 0.0
    %1179 = vmatprep.subr.mxu0 0.0
    %1180 = vmatpush1.msra.mxu0 0.0
    %1181 = vmatprep.subr.mxu0 0.0
    %1182 = vmatpush1.msra.mxu0 0.0
    %1183 = vmatprep.subr.mxu0 0.0
    %1184 = vmatpush1.msra.mxu0 0.0
    %1185 = vmatprep.subr.mxu0 0.0
    %1186 = vmatpush1.msra.mxu0 0.0
    %1187 = vmatprep.subr.mxu0 0.0
    %1188 = vmatpush1.msra.mxu0 0.0
    %1189 = vmatprep.subr.mxu0 0.0
    %1190 = vmatpush1.msra.mxu0 0.0
    %1191 = vmatprep.subr.mxu0 0.0
    %1192 = vmatpush1.msra.mxu0 0.0
    %1193 = vmatprep.subr.mxu0 0.0
    %1194 = vmatpush1.msra.mxu0 0.0
    %1195 = vmatprep.subr.mxu0 0.0
    %1196 = vmatpush1.msra.mxu0 0.0
    %1197 = vmatprep.subr.mxu0 0.0
    %1198 = vmatpush1.msra.mxu0 0.0
    %1199 = vmatprep.subr.mxu0 0.0
    %1200 = vmatpush1.msra.mxu0 0.0
    %1201 = vmatprep.subr.mxu0 0.0
    %1202 = vmatpush1.msra.mxu0 0.0
    %1203 = vmatprep.mubr.f32.mxu0 0.0
    %1204 = vmatmul.mubr.f32.gmra.mrb[0].mxu0 %v1137
    %v1205 = vpop.f32.mrb[0].mxu0
    %v1206 = vadd.f32 0.0, %v1205
    %v1207 = vpop.f32.mrb[0].mxu0
    %1208 = vdwg.mxu0
    %1209 = vrot.lane.b32.xlu0 %v261, 64
    %v1210 = vpop.permute.xlu0 %1209
    %v1213 = vsel %vm266, %v964, 0
    %1215 = vmatprep.subr.mxu0 0.0
    %1216 = vmatpush1.msra.mxu0 %v1210
    %1217 = vmatprep.subr.mxu0 0.0
    %1218 = vmatpush1.msra.mxu0 0.0
    %1219 = vmatprep.subr.mxu0 0.0
    %1220 = vmatpush1.msra.mxu0 0.0
    %1221 = vmatprep.subr.mxu0 0.0
    %1222 = vmatpush1.msra.mxu0 0.0
    %1223 = vmatprep.subr.mxu0 0.0
    %1224 = vmatpush1.msra.mxu0 0.0
    %1225 = vmatprep.subr.mxu0 0.0
    %1226 = vmatpush1.msra.mxu0 0.0
    %1227 = vmatprep.subr.mxu0 0.0
    %1228 = vmatpush1.msra.mxu0 0.0
    %1229 = vmatprep.subr.mxu0 0.0
    %1230 = vmatpush1.msra.mxu0 0.0
    %1231 = vmatprep.subr.mxu0 0.0
    %1232 = vmatpush1.msra.mxu0 0.0
    %1233 = vmatprep.subr.mxu0 0.0
    %1234 = vmatpush1.msra.mxu0 0.0
    %1235 = vmatprep.subr.mxu0 0.0
    %1236 = vmatpush1.msra.mxu0 0.0
    %1237 = vmatprep.subr.mxu0 0.0
    %1238 = vmatpush1.msra.mxu0 0.0
    %1239 = vmatprep.subr.mxu0 0.0
    %1240 = vmatpush1.msra.mxu0 0.0
    %1241 = vmatprep.subr.mxu0 0.0
    %1242 = vmatpush1.msra.mxu0 0.0
    %1243 = vmatprep.subr.mxu0 0.0
    %1244 = vmatpush1.msra.mxu0 0.0
    %1245 = vmatprep.subr.mxu0 0.0
    %1246 = vmatpush1.msra.mxu0 0.0
    %1247 = vmatprep.subr.mxu0 0.0
    %1248 = vmatpush1.msra.mxu0 0.0
    %1249 = vmatprep.subr.mxu0 0.0
    %1250 = vmatpush1.msra.mxu0 0.0
    %1251 = vmatprep.subr.mxu0 0.0
    %1252 = vmatpush1.msra.mxu0 0.0
    %1253 = vmatprep.subr.mxu0 0.0
    %1254 = vmatpush1.msra.mxu0 0.0
    %1255 = vmatprep.subr.mxu0 0.0
    %1256 = vmatpush1.msra.mxu0 0.0
    %1257 = vmatprep.subr.mxu0 0.0
    %1258 = vmatpush1.msra.mxu0 0.0
    %1259 = vmatprep.subr.mxu0 0.0
    %1260 = vmatpush1.msra.mxu0 0.0
    %1261 = vmatprep.subr.mxu0 0.0
    %1262 = vmatpush1.msra.mxu0 0.0
    %1263 = vmatprep.subr.mxu0 0.0
    %1264 = vmatpush1.msra.mxu0 0.0
    %1265 = vmatprep.subr.mxu0 0.0
    %1266 = vmatpush1.msra.mxu0 0.0
    %1267 = vmatprep.subr.mxu0 0.0
    %1268 = vmatpush1.msra.mxu0 0.0
    %1269 = vmatprep.subr.mxu0 0.0
    %1270 = vmatpush1.msra.mxu0 0.0
    %1271 = vmatprep.subr.mxu0 0.0
    %1272 = vmatpush1.msra.mxu0 0.0
    %1273 = vmatprep.subr.mxu0 0.0
    %1274 = vmatpush1.msra.mxu0 0.0
    %1275 = vmatprep.subr.mxu0 0.0
    %1276 = vmatpush1.msra.mxu0 0.0
    %1277 = vmatprep.subr.mxu0 0.0
    %1278 = vmatpush1.msra.mxu0 0.0
    %1279 = vmatprep.mubr.f32.mxu0 0.0
    %1280 = vmatmul.mubr.f32.gmra.mrb[0].mxu0 %v1213
    %v1281 = vpop.f32.mrb[0].mxu0
    %v1282 = vadd.f32 0.0, %v1281
    %v1283 = vpop.f32.mrb[0].mxu0
    %1284 = vdwg.mxu0
    %1285 = vrot.lane.b32.xlu0 %v247, 64
    %v1286 = vpop.permute.xlu0 %1285
    %v1289 = vsel %vm266, %v966, 0
    %1291 = vmatprep.subr.mxu0 0.0
    %1292 = vmatpush1.msra.mxu0 %v1286
    %1293 = vmatprep.subr.mxu0 0.0
    %1294 = vmatpush1.msra.mxu0 0.0
    %1295 = vmatprep.subr.mxu0 0.0
    %1296 = vmatpush1.msra.mxu0 0.0
    %1297 = vmatprep.subr.mxu0 0.0
    %1298 = vmatpush1.msra.mxu0 0.0
    %1299 = vmatprep.subr.mxu0 0.0
    %1300 = vmatpush1.msra.mxu0 0.0
    %1301 = vmatprep.subr.mxu0 0.0
    %1302 = vmatpush1.msra.mxu0 0.0
    %1303 = vmatprep.subr.mxu0 0.0
    %1304 = vmatpush1.msra.mxu0 0.0
    %1305 = vmatprep.subr.mxu0 0.0
    %1306 = vmatpush1.msra.mxu0 0.0
    %1307 = vmatprep.subr.mxu0 0.0
    %1308 = vmatpush1.msra.mxu0 0.0
    %1309 = vmatprep.subr.mxu0 0.0
    %1310 = vmatpush1.msra.mxu0 0.0
    %1311 = vmatprep.subr.mxu0 0.0
    %1312 = vmatpush1.msra.mxu0 0.0
    %1313 = vmatprep.subr.mxu0 0.0
    %1314 = vmatpush1.msra.mxu0 0.0
    %1315 = vmatprep.subr.mxu0 0.0
    %1316 = vmatpush1.msra.mxu0 0.0
    %1317 = vmatprep.subr.mxu0 0.0
    %1318 = vmatpush1.msra.mxu0 0.0
    %1319 = vmatprep.subr.mxu0 0.0
    %1320 = vmatpush1.msra.mxu0 0.0
    %1321 = vmatprep.subr.mxu0 0.0
    %1322 = vmatpush1.msra.mxu0 0.0
    %1323 = vmatprep.subr.mxu0 0.0
    %1324 = vmatpush1.msra.mxu0 0.0
    %1325 = vmatprep.subr.mxu0 0.0
    %1326 = vmatpush1.msra.mxu0 0.0
    %1327 = vmatprep.subr.mxu0 0.0
    %1328 = vmatpush1.msra.mxu0 0.0
    %1329 = vmatprep.subr.mxu0 0.0
    %1330 = vmatpush1.msra.mxu0 0.0
    %1331 = vmatprep.subr.mxu0 0.0
    %1332 = vmatpush1.msra.mxu0 0.0
    %1333 = vmatprep.subr.mxu0 0.0
    %1334 = vmatpush1.msra.mxu0 0.0
    %1335 = vmatprep.subr.mxu0 0.0
    %1336 = vmatpush1.msra.mxu0 0.0
    %1337 = vmatprep.subr.mxu0 0.0
    %1338 = vmatpush1.msra.mxu0 0.0
    %1339 = vmatprep.subr.mxu0 0.0
    %1340 = vmatpush1.msra.mxu0 0.0
    %1341 = vmatprep.subr.mxu0 0.0
    %1342 = vmatpush1.msra.mxu0 0.0
    %1343 = vmatprep.subr.mxu0 0.0
    %1344 = vmatpush1.msra.mxu0 0.0
    %1345 = vmatprep.subr.mxu0 0.0
    %1346 = vmatpush1.msra.mxu0 0.0
    %1347 = vmatprep.subr.mxu0 0.0
    %1348 = vmatpush1.msra.mxu0 0.0
    %1349 = vmatprep.subr.mxu0 0.0
    %1350 = vmatpush1.msra.mxu0 0.0
    %1351 = vmatprep.subr.mxu0 0.0
    %1352 = vmatpush1.msra.mxu0 0.0
    %1353 = vmatprep.subr.mxu0 0.0
    %1354 = vmatpush1.msra.mxu0 0.0
    %1355 = vmatprep.mubr.f32.mxu0 0.0
    %1356 = vmatmul.mubr.f32.gmra.mrb[0].mxu0 %v1289
    %v1357 = vpop.f32.mrb[0].mxu0
    %v1358 = vadd.f32 0.0, %v1357
    %v1359 = vpop.f32.mrb[0].mxu0
    %1360 = vdwg.mxu0
    %1361 = vrot.lane.b32.xlu0 %v255, 64
    %v1362 = vpop.permute.xlu0 %1361
    %v1365 = vsel %vm266, %v968, 0
    %1367 = vmatprep.subr.mxu0 0.0
    %1368 = vmatpush1.msra.mxu0 %v1362
    %1369 = vmatprep.subr.mxu0 0.0
    %1370 = vmatpush1.msra.mxu0 0.0
    %1371 = vmatprep.subr.mxu0 0.0
    %1372 = vmatpush1.msra.mxu0 0.0
    %1373 = vmatprep.subr.mxu0 0.0
    %1374 = vmatpush1.msra.mxu0 0.0
    %1375 = vmatprep.subr.mxu0 0.0
    %1376 = vmatpush1.msra.mxu0 0.0
    %1377 = vmatprep.subr.mxu0 0.0
    %1378 = vmatpush1.msra.mxu0 0.0
    %1379 = vmatprep.subr.mxu0 0.0
    %1380 = vmatpush1.msra.mxu0 0.0
    %1381 = vmatprep.subr.mxu0 0.0
    %1382 = vmatpush1.msra.mxu0 0.0
    %1383 = vmatprep.subr.mxu0 0.0
    %1384 = vmatpush1.msra.mxu0 0.0
    %1385 = vmatprep.subr.mxu0 0.0
    %1386 = vmatpush1.msra.mxu0 0.0
    %1387 = vmatprep.subr.mxu0 0.0
    %1388 = vmatpush1.msra.mxu0 0.0
    %1389 = vmatprep.subr.mxu0 0.0
    %1390 = vmatpush1.msra.mxu0 0.0
    %1391 = vmatprep.subr.mxu0 0.0
    %1392 = vmatpush1.msra.mxu0 0.0
    %1393 = vmatprep.subr.mxu0 0.0
    %1394 = vmatpush1.msra.mxu0 0.0
    %1395 = vmatprep.subr.mxu0 0.0
    %1396 = vmatpush1.msra.mxu0 0.0
    %1397 = vmatprep.subr.mxu0 0.0
    %1398 = vmatpush1.msra.mxu0 0.0
    %1399 = vmatprep.subr.mxu0 0.0
    %1400 = vmatpush1.msra.mxu0 0.0
    %1401 = vmatprep.subr.mxu0 0.0
    %1402 = vmatpush1.msra.mxu0 0.0
    %1403 = vmatprep.subr.mxu0 0.0
    %1404 = vmatpush1.msra.mxu0 0.0
    %1405 = vmatprep.subr.mxu0 0.0
    %1406 = vmatpush1.msra.mxu0 0.0
    %1407 = vmatprep.subr.mxu0 0.0
    %1408 = vmatpush1.msra.mxu0 0.0
    %1409 = vmatprep.subr.mxu0 0.0
    %1410 = vmatpush1.msra.mxu0 0.0
    %1411 = vmatprep.subr.mxu0 0.0
    %1412 = vmatpush1.msra.mxu0 0.0
    %1413 = vmatprep.subr.mxu0 0.0
    %1414 = vmatpush1.msra.mxu0 0.0
    %1415 = vmatprep.subr.mxu0 0.0
    %1416 = vmatpush1.msra.mxu0 0.0
    %1417 = vmatprep.subr.mxu0 0.0
    %1418 = vmatpush1.msra.mxu0 0.0
    %1419 = vmatprep.subr.mxu0 0.0
    %1420 = vmatpush1.msra.mxu0 0.0
    %1421 = vmatprep.subr.mxu0 0.0
    %1422 = vmatpush1.msra.mxu0 0.0
    %1423 = vmatprep.subr.mxu0 0.0
    %1424 = vmatpush1.msra.mxu0 0.0
    %1425 = vmatprep.subr.mxu0 0.0
    %1426 = vmatpush1.msra.mxu0 0.0
    %1427 = vmatprep.subr.mxu0 0.0
    %1428 = vmatpush1.msra.mxu0 0.0
    %1429 = vmatprep.subr.mxu0 0.0
    %1430 = vmatpush1.msra.mxu0 0.0
    %1431 = vmatprep.mubr.f32.mxu0 0.0
    %1432 = vmatmul.mubr.f32.gmra.mrb[0].mxu0 %v1365
    %v1433 = vpop.f32.mrb[0].mxu0
    %v1434 = vadd.f32 0.0, %v1433
    %v1435 = vpop.f32.mrb[0].mxu0
    %1436 = vdwg.mxu0
    %1437 = vrot.lane.b32.xlu0 %v259, 64
    %v1438 = vpop.permute.xlu0 %1437
    %v1441 = vsel %vm266, %v970, 0
    %1443 = vmatprep.subr.mxu0 0.0
    %1444 = vmatpush1.msra.mxu0 %v1438
    %1445 = vmatprep.subr.mxu0 0.0
    %1446 = vmatpush1.msra.mxu0 0.0
    %1447 = vmatprep.subr.mxu0 0.0
    %1448 = vmatpush1.msra.mxu0 0.0
    %1449 = vmatprep.subr.mxu0 0.0
    %1450 = vmatpush1.msra.mxu0 0.0
    %1451 = vmatprep.subr.mxu0 0.0
    %1452 = vmatpush1.msra.mxu0 0.0
    %1453 = vmatprep.subr.mxu0 0.0
    %1454 = vmatpush1.msra.mxu0 0.0
    %1455 = vmatprep.subr.mxu0 0.0
    %1456 = vmatpush1.msra.mxu0 0.0
    %1457 = vmatprep.subr.mxu0 0.0
    %1458 = vmatpush1.msra.mxu0 0.0
    %1459 = vmatprep.subr.mxu0 0.0
    %1460 = vmatpush1.msra.mxu0 0.0
    %1461 = vmatprep.subr.mxu0 0.0
    %1462 = vmatpush1.msra.mxu0 0.0
    %1463 = vmatprep.subr.mxu0 0.0
    %1464 = vmatpush1.msra.mxu0 0.0
    %1465 = vmatprep.subr.mxu0 0.0
    %1466 = vmatpush1.msra.mxu0 0.0
    %1467 = vmatprep.subr.mxu0 0.0
    %1468 = vmatpush1.msra.mxu0 0.0
    %1469 = vmatprep.subr.mxu0 0.0
    %1470 = vmatpush1.msra.mxu0 0.0
    %1471 = vmatprep.subr.mxu0 0.0
    %1472 = vmatpush1.msra.mxu0 0.0
    %1473 = vmatprep.subr.mxu0 0.0
    %1474 = vmatpush1.msra.mxu0 0.0
    %1475 = vmatprep.subr.mxu0 0.0
    %1476 = vmatpush1.msra.mxu0 0.0
    %1477 = vmatprep.subr.mxu0 0.0
    %1478 = vmatpush1.msra.mxu0 0.0
    %1479 = vmatprep.subr.mxu0 0.0
    %1480 = vmatpush1.msra.mxu0 0.0
    %1481 = vmatprep.subr.mxu0 0.0
    %1482 = vmatpush1.msra.mxu0 0.0
    %1483 = vmatprep.subr.mxu0 0.0
    %1484 = vmatpush1.msra.mxu0 0.0
    %1485 = vmatprep.subr.mxu0 0.0
    %1486 = vmatpush1.msra.mxu0 0.0
    %1487 = vmatprep.subr.mxu0 0.0
    %1488 = vmatpush1.msra.mxu0 0.0
    %1489 = vmatprep.subr.mxu0 0.0
    %1490 = vmatpush1.msra.mxu0 0.0
    %1491 = vmatprep.subr.mxu0 0.0
    %1492 = vmatpush1.msra.mxu0 0.0
    %1493 = vmatprep.subr.mxu0 0.0
    %1494 = vmatpush1.msra.mxu0 0.0
    %1495 = vmatprep.subr.mxu0 0.0
    %1496 = vmatpush1.msra.mxu0 0.0
    %1497 = vmatprep.subr.mxu0 0.0
    %1498 = vmatpush1.msra.mxu0 0.0
    %1499 = vmatprep.subr.mxu0 0.0
    %1500 = vmatpush1.msra.mxu0 0.0
    %1501 = vmatprep.subr.mxu0 0.0
    %1502 = vmatpush1.msra.mxu0 0.0
    %1503 = vmatprep.subr.mxu0 0.0
    %1504 = vmatpush1.msra.mxu0 0.0
    %1505 = vmatprep.subr.mxu0 0.0
    %1506 = vmatpush1.msra.mxu0 0.0
    %1507 = vmatprep.mubr.f32.mxu0 0.0
    %1508 = vmatmul.mubr.f32.gmra.mrb[0].mxu0 %v1441
    %v1509 = vpop.f32.mrb[0].mxu0
    %v1510 = vadd.f32 0.0, %v1509
    %v1511 = vpop.f32.mrb[0].mxu0
    %1512 = vdwg.mxu0
    %1513 = vrot.lane.b32.xlu0 %v263, 64
    %v1514 = vpop.permute.xlu0 %1513
    %v1517 = vsel %vm266, %v972, 0
    %1519 = vmatprep.subr.mxu0 0.0
    %1520 = vmatpush1.msra.mxu0 %v1514
    %1521 = vmatprep.subr.mxu0 0.0
    %1522 = vmatpush1.msra.mxu0 0.0
    %1523 = vmatprep.subr.mxu0 0.0
    %1524 = vmatpush1.msra.mxu0 0.0
    %1525 = vmatprep.subr.mxu0 0.0
    %1526 = vmatpush1.msra.mxu0 0.0
    %1527 = vmatprep.subr.mxu0 0.0
    %1528 = vmatpush1.msra.mxu0 0.0
    %1529 = vmatprep.subr.mxu0 0.0
    %1530 = vmatpush1.msra.mxu0 0.0
    %1531 = vmatprep.subr.mxu0 0.0
    %1532 = vmatpush1.msra.mxu0 0.0
    %1533 = vmatprep.subr.mxu0 0.0
    %1534 = vmatpush1.msra.mxu0 0.0
    %1535 = vmatprep.subr.mxu0 0.0
    %1536 = vmatpush1.msra.mxu0 0.0
    %1537 = vmatprep.subr.mxu0 0.0
    %1538 = vmatpush1.msra.mxu0 0.0
    %1539 = vmatprep.subr.mxu0 0.0
    %1540 = vmatpush1.msra.mxu0 0.0
    %1541 = vmatprep.subr.mxu0 0.0
    %1542 = vmatpush1.msra.mxu0 0.0
    %1543 = vmatprep.subr.mxu0 0.0
    %1544 = vmatpush1.msra.mxu0 0.0
    %1545 = vmatprep.subr.mxu0 0.0
    %1546 = vmatpush1.msra.mxu0 0.0
    %1547 = vmatprep.subr.mxu0 0.0
    %1548 = vmatpush1.msra.mxu0 0.0
    %1549 = vmatprep.subr.mxu0 0.0
    %1550 = vmatpush1.msra.mxu0 0.0
    %1551 = vmatprep.subr.mxu0 0.0
    %1552 = vmatpush1.msra.mxu0 0.0
    %1553 = vmatprep.subr.mxu0 0.0
    %1554 = vmatpush1.msra.mxu0 0.0
    %1555 = vmatprep.subr.mxu0 0.0
    %1556 = vmatpush1.msra.mxu0 0.0
    %1557 = vmatprep.subr.mxu0 0.0
    %1558 = vmatpush1.msra.mxu0 0.0
    %1559 = vmatprep.subr.mxu0 0.0
    %1560 = vmatpush1.msra.mxu0 0.0
    %1561 = vmatprep.subr.mxu0 0.0
    %1562 = vmatpush1.msra.mxu0 0.0
    %1563 = vmatprep.subr.mxu0 0.0
    %1564 = vmatpush1.msra.mxu0 0.0
    %1565 = vmatprep.subr.mxu0 0.0
    %1566 = vmatpush1.msra.mxu0 0.0
    %1567 = vmatprep.subr.mxu0 0.0
    %1568 = vmatpush1.msra.mxu0 0.0
    %1569 = vmatprep.subr.mxu0 0.0
    %1570 = vmatpush1.msra.mxu0 0.0
    %1571 = vmatprep.subr.mxu0 0.0
    %1572 = vmatpush1.msra.mxu0 0.0
    %1573 = vmatprep.subr.mxu0 0.0
    %1574 = vmatpush1.msra.mxu0 0.0
    %1575 = vmatprep.subr.mxu0 0.0
    %1576 = vmatpush1.msra.mxu0 0.0
    %1577 = vmatprep.subr.mxu0 0.0
    %1578 = vmatpush1.msra.mxu0 0.0
    %1579 = vmatprep.subr.mxu0 0.0
    %1580 = vmatpush1.msra.mxu0 0.0
    %1581 = vmatprep.subr.mxu0 0.0
    %1582 = vmatpush1.msra.mxu0 0.0
    %1583 = vmatprep.mubr.f32.mxu0 0.0
    %1584 = vmatmul.mubr.f32.gmra.mrb[0].mxu0 %v1517
    %v1585 = vpop.f32.mrb[0].mxu0
    %v1586 = vadd.f32 0.0, %v1585
    %v1587 = vpop.f32.mrb[0].mxu0
    %1588 = vdwg.mxu0
    %1591 = vrot.lane.b32.xlu0 %v1130, 8
    %v1592 = vpop.permute.xlu0 %1591
    %1593 = vrot.lane.b32.xlu0 %v1434, 8
    %v1594 = vpop.permute.xlu0 %1593
    %1599 = vrot.lane.b32.xlu0 %v1206, 16
    %v1600 = vpop.permute.xlu0 %1599
    %1601 = vrot.lane.b32.xlu0 %v1510, 16
    %v1602 = vpop.permute.xlu0 %1601
    %1607 = vrot.lane.b32.xlu0 %v1282, 24
    %v1608 = vpop.permute.xlu0 %1607
    %1609 = vrot.lane.b32.xlu0 %v1586, 24
    %v1610 = vpop.permute.xlu0 %1609
    %v1613 = vsel %vm266, %v1054, %v1592
    %v1614 = vsel %vm266, %v1358, %v1594
    %vm1615 = vcmask 130048
    %v1616 = vsel %vm1615, %v1613, %v1600
    %v1617 = vsel %vm1615, %v1614, %v1602
    %vm1618 = vcmask 195584
    %v1619 = vsel %vm1618, %v1616, %v1608
    %v1620 = vsel %vm1618, %v1617, %v1610
    %v1621 = vld [vmem:[#allocation11] sm:$0xff]
    %v1622 = vld [vmem:[#allocation11 + $0x8] sm:$0xff]
    %v1623 = vld [vmem:[#allocation11 + $0x10] sm:$0xff]
    %v1624 = vld [vmem:[#allocation11 + $0x18] sm:$0xff]
    %v1625 = vld [vmem:[%s7] sm:$0x1]
    %v1627 = vlaneseq
    %v1628 = vshrl.u32 %v1627, 7
    %v1629 = vsub.s32 0, %v1628
    %v1630 = vrot.slane %v1625, %v1629
    %v1633 = vsel %vm143, %v1619, 0
    %v1636 = vsel %vm143, %v1620, 0
    %1638 = vmatprep.subr.mxu0 0.0
    %1639 = vmatpush1.msra.mxu0 %v1621
    %1640 = vmatprep.subr.mxu0 0.0
    %1641 = vmatpush1.msra.mxu0 %v1622
    %1642 = vmatprep.subr.mxu0 0.0
    %1643 = vmatpush1.msra.mxu0 %v1623
    %1644 = vmatprep.subr.mxu0 0.0
    %1645 = vmatpush1.msra.mxu0 %v1624
    %1646 = vmatprep.subr.mxu0 0.0
    %1647 = vmatpush1.msra.mxu0 0.0
    %1648 = vmatprep.subr.mxu0 0.0
    %1649 = vmatpush1.msra.mxu0 0.0
    %1650 = vmatprep.subr.mxu0 0.0
    %1651 = vmatpush1.msra.mxu0 0.0
    %1652 = vmatprep.subr.mxu0 0.0
    %1653 = vmatpush1.msra.mxu0 0.0
    %1654 = vmatprep.subr.mxu0 0.0
    %1655 = vmatpush1.msra.mxu0 0.0
    %1656 = vmatprep.subr.mxu0 0.0
    %1657 = vmatpush1.msra.mxu0 0.0
    %1658 = vmatprep.subr.mxu0 0.0
    %1659 = vmatpush1.msra.mxu0 0.0
    %1660 = vmatprep.subr.mxu0 0.0
    %1661 = vmatpush1.msra.mxu0 0.0
    %1662 = vmatprep.subr.mxu0 0.0
    %1663 = vmatpush1.msra.mxu0 0.0
    %1664 = vmatprep.subr.mxu0 0.0
    %1665 = vmatpush1.msra.mxu0 0.0
    %1666 = vmatprep.subr.mxu0 0.0
    %1667 = vmatpush1.msra.mxu0 0.0
    %1668 = vmatprep.subr.mxu0 0.0
    %1669 = vmatpush1.msra.mxu0 0.0
    %1670 = vmatprep.subr.mxu0 0.0
    %1671 = vmatpush1.msra.mxu0 0.0
    %1672 = vmatprep.subr.mxu0 0.0
    %1673 = vmatpush1.msra.mxu0 0.0
    %1674 = vmatprep.subr.mxu0 0.0
    %1675 = vmatpush1.msra.mxu0 0.0
    %1676 = vmatprep.subr.mxu0 0.0
    %1677 = vmatpush1.msra.mxu0 0.0
    %1678 = vmatprep.subr.mxu0 0.0
    %1679 = vmatpush1.msra.mxu0 0.0
    %1680 = vmatprep.subr.mxu0 0.0
    %1681 = vmatpush1.msra.mxu0 0.0
    %1682 = vmatprep.subr.mxu0 0.0
    %1683 = vmatpush1.msra.mxu0 0.0
    %1684 = vmatprep.subr.mxu0 0.0
    %1685 = vmatpush1.msra.mxu0 0.0
    %1686 = vmatprep.subr.mxu0 0.0
    %1687 = vmatpush1.msra.mxu0 0.0
    %1688 = vmatprep.subr.mxu0 0.0
    %1689 = vmatpush1.msra.mxu0 0.0
    %1690 = vmatprep.subr.mxu0 0.0
    %1691 = vmatpush1.msra.mxu0 0.0
    %1692 = vmatprep.subr.mxu0 0.0
    %1693 = vmatpush1.msra.mxu0 0.0
    %1694 = vmatprep.subr.mxu0 0.0
    %1695 = vmatpush1.msra.mxu0 0.0
    %1696 = vmatprep.subr.mxu0 0.0
    %1697 = vmatpush1.msra.mxu0 0.0
    %1698 = vmatprep.subr.mxu0 0.0
    %1699 = vmatpush1.msra.mxu0 0.0
    %1700 = vmatprep.subr.mxu0 0.0
    %1701 = vmatpush1.msra.mxu0 0.0
    %1702 = vmatprep.mubr.f32.mxu0 0.0
    %1703 = vmatmul.mubr.f32.gmra.mrb[0].mxu0 %v1633
    %v1704 = vpop.f32.mrb[0].mxu0
    %v1705 = vadd.f32 %v1630, %v1704
    %v1706 = vpop.f32.mrb[0].mxu0
    %1707 = vmatprep.mubr.f32.mxu0 0.0
    %1708 = vmatmul.mubr.f32.gmra.mrb[0].mxu0 %v1636
    %v1709 = vpop.f32.mrb[0].mxu0
    %v1710 = vadd.f32 %v1630, %v1709
    %v1711 = vpop.f32.mrb[0].mxu0
    %1712 = vdwg.mxu0
    %v1713 = vadd.f32 %v1705, %v121
    %v1714 = vadd.f32 %v1710, %v122
    %v1715 = vsel %vm143, %v1713, 0.0
    %1716 = vadd.xlane.f32.xlu0 %v1715
    %v1717 = vpop.xlane.xlu0 %1716
    %v1718 = vsel %vm143, %v1714, 0.0
    %1719 = vadd.xlane.f32.xlu0 %v1718
    %v1720 = vpop.xlane.xlu0 %1719
    %v1721 = vrcp.pop 32.0
    %v1722 = vmul.f32 %v1717, %v1721
    %v1723 = vmul.f32 %v1720, %v1721
    %v1724 = vsub.f32 %v1713, %v1722
    %v1725 = vsub.f32 %v1714, %v1723
    %v1726 = vmul.f32 %v1724, %v1724
    %v1727 = vmul.f32 %v1725, %v1725
    %v1728 = vsel %vm143, %v1726, 0.0
    %1729 = vadd.xlane.f32.xlu0 %v1728
    %v1730 = vpop.xlane.xlu0 %1729
    %v1731 = vsel %vm143, %v1727, 0.0
    %1732 = vadd.xlane.f32.xlu0 %v1731
    %v1733 = vpop.xlane.xlu0 %1732
    %v1734 = vmul.f32 %v1730, %v1721
    %v1735 = vmul.f32 %v1733, %v1721
    %v1736 = vadd.f32 %v1734, 1e-05
    %v1737 = vadd.f32 %v1735, 1e-05
    %v1738 = vrsqrt.pop %v1736
    %v1739 = vrsqrt.pop %v1737
    %v1740 = vmul.f32 %v1724, %v1738
    %v1741 = vmul.f32 %v1725, %v1739
    %v1742 = vld [vmem:[%s8] sm:$0x1]
    %v1744 = vlaneseq
    %v1745 = vshrl.u32 %v1744, 7
    %v1746 = vsub.s32 0, %v1745
    %v1747 = vrot.slane %v1742, %v1746
    %v1749 = vmul.f32 %v1740, %v1747
    %v1750 = vmul.f32 %v1741, %v1747
    %v1751 = vld [vmem:[%s9] sm:$0x1]
    %v1753 = vlaneseq
    %v1754 = vshrl.u32 %v1753, 7
    %v1755 = vsub.s32 0, %v1754
    %v1756 = vrot.slane %v1751, %v1755
    %v1758 = vadd.f32 %v1749, %v1756
    %v1759 = vadd.f32 %v1750, %v1756
    %1760 = vst.msk [vmem:[#allocation13] sm:$0xff] %vm143, %v1758
    %1761 = vst.msk [vmem:[#allocation13 + $0x8] sm:$0xff] %vm143, %v1759
    // Predicated region
    $region66: #{tpu_custom_call.1} parent=1 // pred_check
      _
    $region67: #{tpu_custom_call.1} parent=1 // pred_check_branch
      %1763 = sbr.rel (0) target = $region69
    $region68: #{tpu_custom_call.1} parent=1 // pred_region
      %s1765 = ssub.s32 256, 256
      %1766 = vsyncadd [#allocation4], %s1765
      %s1767 = sshll.u32 [#allocation13], 4
      %s1768 = int_to_ptr.vmem [resolvable:$true] %s1767
      %1773 = dma.vmem_to_hbm [thread:$0]  %s1768, 256, %s10, [#allocation4], 128, 128, 8
    $region69: #{tpu_custom_call.1} parent=1 // pred_fallthru
      _
    // Predicated region
    $region70: #{tpu_custom_call.1} parent=1 // pred_check
      _
    $region71: #{tpu_custom_call.1} parent=1 // pred_check_branch
      %1775 = sbr.rel (0) target = $region73
    $region72: #{tpu_custom_call.1} parent=1 // pred_region
      %s1777 = ssub.s32 1024, 1024
      %1778 = vsyncadd [#allocation15], %s1777
      %s1779 = sshll.u32 [#allocation14], 4
      %s1780 = int_to_ptr.vmem [resolvable:$true] %s1779
      %1785 = dma.vmem_to_hbm [thread:$0]  %s1780, 1024, %s11, [#allocation15], 128, 128, 8
    $region73: #{tpu_custom_call.1} parent=1 // pred_fallthru
      _
    // Predicated region
    $region74: #{tpu_custom_call.1} parent=1 // pred_check
      _
    $region75: #{tpu_custom_call.1} parent=1 // pred_check_branch
      %1787 = sbr.rel (0) target = $region77
    $region76: #{tpu_custom_call.1} parent=1 // pred_region
      %1788 = dma.done [#allocation4], 256
    $region77: #{tpu_custom_call.1} parent=1 // pred_fallthru
      _
    // Predicated region
    $region78: #{tpu_custom_call.1} parent=1 // pred_check
      _
    $region79: #{tpu_custom_call.1} parent=1 // pred_check_branch
      %1790 = sbr.rel (0) target = $region81
    $region80: #{tpu_custom_call.1} parent=1 // pred_region
      %1791 = dma.done [#allocation15], 1024
    $region81: #{tpu_custom_call.1} parent=1 // pred_fallthru
      _
    %1792 = vsyncpa [#allocation3], 1
    %1793 = vsyncpa [#allocation6], 1
    %1794 = vsyncpa [#allocation9], 1
    %1795 = vsyncpa [#allocation12], 1
    %1796 = vsyncpa [#allocation4], 1
    %1797 = vsyncpa [#allocation15], 1

</llo_original>
